<compile_context>
chip_gen: v5e
topology: v5e:2x2
jax: 0.10.0
libtpu: 0.0.40
codegen_flags: <defaults>
</compile_context>

<pallas_src>
import functools

import jax
import jax.numpy as jnp
from jax import lax
from jax.experimental import pallas as pl
from jax.experimental.pallas import tpu as pltpu

M_CAP = 1024                      # max block along M
N_CAP = 1024                      # max block along N (output lanes)
K_CAP = 2048                      # max block along K (reduction)
VMEM_LIMIT = 48 * 1024 * 1024     # <= v7x 64 MiB physical VMEM


def _rup(x, m):
    return (x + m - 1) // m * m


def _cdiv(a, b):
    return -(-a // b)


def _pick_block(dim, cap):
    """128-aligned block <= cap minimizing padding; prefer 256-aligned ties."""
    d = _rup(dim, 128)
    if d <= cap:
        return d, d
    n0 = _cdiv(d, cap)
    best_key, best = None, None
    for nblk in range(n0, n0 + 4):
        for align in (256, 128):
            blk = _rup(_cdiv(d, nblk), align)
            if blk > cap:
                continue
            tot = blk * nblk
            key = (tot, 0 if blk % 256 == 0 else 1)
            if best_key is None or key < best_key:
                best_key, best = key, (blk, tot)
    return best


def _apply_act(y, act):
    if act == "relu":
        return jnp.maximum(y, 0.0)
    if act == "leaky":                       # LeakyReLU(0.2) as in the reference
        return jnp.where(y >= 0.0, y, 0.2 * y)
    if act == "relu_sigmoid":                # Sigmoid(ReLU(BN(Conv(.))))
        return jax.nn.sigmoid(jnp.maximum(y, 0.0))
    return y


# ----------------------------------------------------------------------------
# Fused Pallas matmul kernels:  out = act( (X @ W) * scale + shift )
# ----------------------------------------------------------------------------
def _mm_kernel_single(x_ref, w_ref, s_ref, b_ref, o_ref, *, act):
    # single K step: no accumulator scratch, no output revisits.
    y = jnp.dot(x_ref[...], w_ref[...], preferred_element_type=jnp.float32)
    y = _apply_act(y * s_ref[...] + b_ref[...], act)
    o_ref[...] = y.astype(o_ref.dtype)


def _mm_kernel_multi(x_ref, w_ref, s_ref, b_ref, o_ref, acc_ref, *, act):
    @pl.when(pl.program_id(2) == 0)
    def _init():
        acc_ref[...] = jnp.zeros_like(acc_ref)

    acc_ref[...] += jnp.dot(x_ref[...], w_ref[...],
                            preferred_element_type=jnp.float32)

    @pl.when(pl.program_id(2) == pl.num_programs(2) - 1)
    def _fin():
        y = _apply_act(acc_ref[...] * s_ref[...] + b_ref[...], act)
        o_ref[...] = y.astype(o_ref.dtype)


@functools.partial(jax.jit, static_argnames=("bm", "bn", "bk", "act", "out_dtype"))
def _padded_matmul(xp, wp, sp, bp, *, bm, bn, bk, act, out_dtype):
    Mp, Kp = xp.shape
    _, Np = wp.shape
    nm, nn, nk = Mp // bm, Np // bn, Kp // bk
    if nk == 1:
        return pl.pallas_call(
            functools.partial(_mm_kernel_single, act=act),
            out_shape=jax.ShapeDtypeStruct((Mp, Np), out_dtype),
            grid_spec=pltpu.PrefetchScalarGridSpec(
                num_scalar_prefetch=0,
                grid=(nm, nn),
                in_specs=[
                    pl.BlockSpec((bm, bk), lambda i, j: (i, 0)),
                    pl.BlockSpec((bk, bn), lambda i, j: (0, j)),
                    pl.BlockSpec((1, bn), lambda i, j: (0, j)),
                    pl.BlockSpec((1, bn), lambda i, j: (0, j)),
                ],
                out_specs=pl.BlockSpec((bm, bn), lambda i, j: (i, j)),
            ),
            compiler_params=pltpu.CompilerParams(
                dimension_semantics=("parallel", "parallel"),
                vmem_limit_bytes=VMEM_LIMIT),
        )(xp, wp, sp, bp)
    return pl.pallas_call(
        functools.partial(_mm_kernel_multi, act=act),
        out_shape=jax.ShapeDtypeStruct((Mp, Np), out_dtype),
        grid_spec=pltpu.PrefetchScalarGridSpec(
            num_scalar_prefetch=0,
            grid=(nm, nn, nk),
            in_specs=[
                pl.BlockSpec((bm, bk), lambda i, j, k: (i, k)),
                pl.BlockSpec((bk, bn), lambda i, j, k: (k, j)),
                pl.BlockSpec((1, bn), lambda i, j, k: (0, j)),
                pl.BlockSpec((1, bn), lambda i, j, k: (0, j)),
            ],
            out_specs=pl.BlockSpec((bm, bn), lambda i, j, k: (i, j)),
            scratch_shapes=[pltpu.VMEM((bm, bn), jnp.float32)],
        ),
        compiler_params=pltpu.CompilerParams(
            dimension_semantics=("parallel", "parallel", "arbitrary"),
            vmem_limit_bytes=VMEM_LIMIT),
    )(xp, wp, sp, bp)


def fused_matmul(x, w, scale, shift, *, act="none", out_dtype=jnp.bfloat16):
    """Both operands are runtime activations. x:[M,K] w:[K,N] scale/shift:[N]."""
    M, K = x.shape
    Kw, N = w.shape
    assert K == Kw
    bm, Mp = _pick_block(M, M_CAP)
    bn, Np = _pick_block(N, N_CAP)
    bk, Kp = _pick_block(K, K_CAP)
    if x.dtype != jnp.bfloat16:
        x = x.astype(jnp.bfloat16)
    if w.dtype != jnp.bfloat16:
        w = w.astype(jnp.bfloat16)
    if (Mp - M) or (Kp - K):
        x = jnp.pad(x, ((0, Mp - M), (0, Kp - K)))
    if (Kp - K) or (Np - N):
        w = jnp.pad(w, ((0, Kp - K), (0, Np - N)))
    sp = scale.astype(jnp.float32).reshape(1, N)
    bp = shift.astype(jnp.float32).reshape(1, N)
    if Np - N:
        sp = jnp.pad(sp, ((0, 0), (0, Np - N)))
        bp = jnp.pad(bp, ((0, 0), (0, Np - N)))
    out = _padded_matmul(x, wp=None or w, sp=sp, bp=bp, bm=bm, bn=bn, bk=bk,
                         act=act, out_dtype=out_dtype) if False else \
        _padded_matmul(x, w, sp, bp, bm=bm, bn=bn, bk=bk,
                       act=act, out_dtype=out_dtype)
    if (Mp - M) or (Np - N):
        out = out[:M, :N]
    return out


# -------- pre-padded ("packed") weights: built once at init time ------------
def make_pack(w_kn, scale, shift):
    """Pre-pad a [K,N] weight + per-channel scale/shift to the tile grid (bf16)."""
    K, N = int(w_kn.shape[0]), int(w_kn.shape[1])
    bn, Np = _pick_block(N, N_CAP)
    bk, Kp = _pick_block(K, K_CAP)
    w = jnp.pad(jnp.asarray(w_kn, jnp.bfloat16), ((0, Kp - K), (0, Np - N)))
    sp = jnp.pad(jnp.asarray(scale, jnp.float32).reshape(1, N),
                 ((0, 0), (0, Np - N)))
    bp = jnp.pad(jnp.asarray(shift, jnp.float32).reshape(1, N),
                 ((0, 0), (0, Np - N)))
    return {"w": w, "sp": sp, "bp": bp, "K": K, "N": N, "bn": bn, "bk": bk}


def matmul_packed(x, pack, *, act="none", out_dtype=jnp.bfloat16):
    M, K = x.shape
    assert K == pack["K"], (K, pack["K"])
    wp = pack["w"]
    Kp, Np = wp.shape
    bm, Mp = _pick_block(M, M_CAP)
    if x.dtype != jnp.bfloat16:
        x = x.astype(jnp.bfloat16)
    if (Mp - M) or (Kp - K):
        x = jnp.pad(x, ((0, Mp - M), (0, Kp - K)))
    out = _padded_matmul(x, wp, pack["sp"], pack["bp"],
                         bm=bm, bn=pack["bn"], bk=pack["bk"],
                         act=act, out_dtype=out_dtype)
    N = pack["N"]
    if (Mp - M) or (Np - N):
        out = out[:M, :N]
    return out


# ----------------------------------------------------------------------------
# Fused attention gate kernel: out = sigmoid(relu(BN(relu(q*k) @ Wpsi))) * v
# ----------------------------------------------------------------------------
def _gate_kernel(qk_ref, v_ref, w_ref, s_ref, b_ref, o_ref, *, subp):
    qk = qk_ref[...]
    prod = jnp.maximum(qk[:, :subp] * qk[:, subp:], 0.0)     # psi's leading ReLU
    y = jnp.dot(prod, w_ref[...], preferred_element_type=jnp.float32)
    gate = jax.nn.sigmoid(jnp.maximum(y * s_ref[...] + b_ref[...], 0.0))
    o_ref[...] = (gate[:, 0:1] * v_ref[...].astype(jnp.float32)).astype(o_ref.dtype)


@functools.partial(jax.jit, static_argnames=("bm", "bn", "subp", "out_dtype"))
def _padded_gate(qk, v, w, sp, bp, *, bm, bn, subp, out_dtype):
    Mp = qk.shape[0]
    Np = v.shape[1]
    nm, nn = Mp // bm, Np // bn
    return pl.pallas_call(
        functools.partial(_gate_kernel, subp=subp),
        out_shape=jax.ShapeDtypeStruct((Mp, Np), out_dtype),
        grid_spec=pltpu.PrefetchScalarGridSpec(
            num_scalar_prefetch=0,
            grid=(nm, nn),
            in_specs=[
                pl.BlockSpec((bm, 2 * subp), lambda i, j: (i, 0)),
                pl.BlockSpec((bm, bn), lambda i, j: (i, j)),
                pl.BlockSpec((subp, 128), lambda i, j: (0, 0)),
                pl.BlockSpec((1, 128), lambda i, j: (0, 0)),
                pl.BlockSpec((1, 128), lambda i, j: (0, 0)),
            ],
            out_specs=pl.BlockSpec((bm, bn), lambda i, j: (i, j)),
        ),
        compiler_params=pltpu.CompilerParams(
            dimension_semantics=("parallel", "parallel"),
            vmem_limit_bytes=VMEM_LIMIT),
    )(qk, v, w, sp, bp)


def attention_gate(qk, v, psi_pack):
    """qk: [M, 2*subp] (q|k halves, each zero-padded to subp), v: [M, Cout]."""
    M = qk.shape[0]
    Cout = v.shape[1]
    subp = psi_pack["subp"]
    bm, Mp = _pick_block(M, M_CAP)
    bn, Np = _pick_block(Cout, N_CAP)
    if Mp - M:
        qk = jnp.pad(qk, ((0, Mp - M), (0, 0)))
    if (Mp - M) or (Np - Cout):
        v = jnp.pad(v, ((0, Mp - M), (0, Np - Cout)))
    out = _padded_gate(qk, v, psi_pack["w"], psi_pack["sp"], psi_pack["bp"],
                       bm=bm, bn=bn, subp=subp, out_dtype=jnp.bfloat16)
    if (Mp - M) or (Np - Cout):
        out = out[:M, :Cout]
    return out


# ----------------------------------------------------------------------------
# Conv / pool / resize built on top of the fused matmul
# ----------------------------------------------------------------------------
def conv2d(x, pack, *, padding=0, act="none", dilation=1, out_dtype=jnp.bfloat16):
    """x: [B,H,W,Cin] NHWC bf16; pack: pre-padded conv weight pack. stride==1."""
    B, H, W, C = x.shape
    kh, kw = pack["kh"], pack["kw"]
    if padding > 0:
        x = jnp.pad(x, ((0, 0), (padding, padding), (padding, padding), (0, 0)))
    Hp, Wp = x.shape[1], x.shape[2]
    Ho = Hp - dilation * (kh - 1)
    Wo = Wp - dilation * (kw - 1)
    if kh == 1 and kw == 1:
        patches = x
    else:
        # TODO(synk): fold taps into the Pallas K reduction (shifted index_maps)
        cols = []
        for i in range(kh):
            for j in range(kw):
                di, dj = i * dilation, j * dilation
                cols.append(x[:, di:di + Ho, dj:dj + Wo, :])
        patches = jnp.concatenate(cols, axis=-1)
    y = matmul_packed(patches.reshape(B * Ho * Wo, kh * kw * C), pack,
                      act=act, out_dtype=out_dtype)
    return y.reshape(B, Ho, Wo, pack["N"])


def maxpool2d(x, k, stride, padding=0):
    init = jnp.array(-jnp.inf, dtype=x.dtype)
    return lax.reduce_window(
        x, init, lax.max,
        window_dimensions=(1, k, k, 1),
        window_strides=(1, stride, stride, 1),
        padding=((0, 0), (padding, padding), (padding, padding), (0, 0)))


def upsample_bilinear_align(x, out_h, out_w):
    """F.interpolate(mode='bilinear', align_corners=True) on NHWC."""
    B, H, W, C = x.shape

    def coords(n_in, n_out):
        if n_in == 1 or n_out == 1:
            return jnp.zeros((n_out,), jnp.float32)
        return jnp.arange(n_out, dtype=jnp.float32) * ((n_in - 1) / (n_out - 1))

    sh, sw = coords(H, out_h), coords(W, out_w)
    h0 = jnp.floor(sh).astype(jnp.int32)
    w0 = jnp.floor(sw).astype(jnp.int32)
    h1 = jnp.minimum(h0 + 1, H - 1)
    w1 = jnp.minimum(w0 + 1, W - 1)
    fh = (sh - h0)[None, :, None, None]
    fw = (sw - w0)[None, None, :, None]
    xa = x[:, h0][:, :, w0]
    xb = x[:, h0][:, :, w1]
    xc = x[:, h1][:, :, w0]
    xd = x[:, h1][:, :, w1]
    out = (xa * (1 - fh) * (1 - fw) + xb * (1 - fh) * fw
           + xc * fh * (1 - fw) + xd * fh * fw)
    return out.astype(x.dtype)


# ----------------------------------------------------------------------------
# Deterministic parameter initialization
# ----------------------------------------------------------------------------
class ParamGen:
    def __init__(self, seed=0):
        self._key = jax.random.PRNGKey(seed)
        self._n = 0

    def normal(self, shape, scale):
        self._n += 1
        k = jax.random.fold_in(self._key, self._n)
        return jax.random.normal(k, shape, jnp.float32) * scale


def _pair(k):
    return (k, k) if isinstance(k, int) else tuple(int(v) for v in k)


def init_conv_bn(pg, cin, cout, k, bias=True, eps=1e-3):
    """Conv + BatchNorm (eval mode: mean=0, var=1, gamma=1, beta=0), raw form."""
    kh, kw = _pair(k)
    fan_in = kh * kw * cin
    w = pg.normal((kh, kw, cin, cout), fan_in ** -0.5)
    b = pg.normal((cout,), 0.02) if bias else jnp.zeros((cout,), jnp.float32)
    s = (1.0 + eps) ** -0.5          # gamma / sqrt(var + eps)
    scale = jnp.full((cout,), s, jnp.float32)
    shift = b * s                    # beta + (bias - mean) * scale
    return {"kh": kh, "kw": kw, "cin": cin, "cout": cout,
            "w_raw": w, "scale": scale, "shift": shift}


def pack_conv(c):
    p = make_pack(c["w_raw"].reshape(c["kh"] * c["kw"] * c["cin"], c["cout"]),
                  c["scale"], c["shift"])
    p.update(kh=c["kh"], kw=c["kw"])
    return p


def pack_concat(cs):
    """Fuse several same-input convs (same kh,kw,cin) along the output axis."""
    kh, kw, cin = cs[0]["kh"], cs[0]["kw"], cs[0]["cin"]
    w = jnp.concatenate([c["w_raw"] for c in cs], axis=-1)
    scale = jnp.concatenate([c["scale"] for c in cs])
    shift = jnp.concatenate([c["shift"] for c in cs])
    p = make_pack(w.reshape(kh * kw * cin, w.shape[-1]), scale, shift)
    p.update(kh=kh, kw=kw)
    return p


def pack_qk(q, k):
    """Fuse q & k 1x1 convs; each half zero-padded to subp for the gate kernel."""
    sub = int(q["cout"])
    subp = _rup(sub, 128)

    def padded(c):
        w = c["w_raw"].reshape(c["cin"], sub)
        return (jnp.pad(w, ((0, 0), (0, subp - sub))),
                jnp.pad(c["scale"], (0, subp - sub)),
                jnp.pad(c["shift"], (0, subp - sub)))

    qw, qs, qb = padded(q)
    kw_, ks, kb = padded(k)
    p = make_pack(jnp.concatenate([qw, kw_], axis=-1),
                  jnp.concatenate([qs, ks]), jnp.concatenate([qb, kb]))
    p.update(kh=1, kw=1)
    return p, subp


def pack_psi(psi, sub, subp):
    w = jnp.pad(psi["w_raw"].reshape(sub, 1),
                ((0, subp - sub), (0, 127))).astype(jnp.bfloat16)
    sp = jnp.pad(psi["scale"].reshape(1, 1).astype(jnp.float32),
                 ((0, 0), (0, 127)))
    bp = jnp.pad(psi["shift"].reshape(1, 1).astype(jnp.float32),
                 ((0, 0), (0, 127)))
    return {"w": w, "sp": sp, "bp": bp, "subp": subp}


# ---------------------------- Attention / DoubleConv ------------------------
def init_attention(pg, cin, cout):
    sub = cout // 4
    q = init_conv_bn(pg, cin, sub, 1)
    k = init_conv_bn(pg, cin, sub, 1)
    v = init_conv_bn(pg, cin, cout, 3)
    psi = init_conv_bn(pg, sub, 1, 1)
    qk, subp = pack_qk(q, k)
    return {"qk": qk, "v": pack_conv(v), "psi": pack_psi(psi, sub, subp),
            "cout": cout}


def attention_fwd(p, x):
    B, H, W, _ = x.shape
    qk = conv2d(x, p["qk"], act="relu")                    # [B,H,W,2*subp]
    v = conv2d(x, p["v"], padding=1, act="relu")           # [B,H,W,cout]
    cout = p["cout"]
    out = attention_gate(qk.reshape(B * H * W, qk.shape[-1]),
                         v.reshape(B * H * W, cout), p["psi"])
    return out.reshape(B, H, W, cout)


def init_double_conv(pg, cin, cout):
    return {"a1": init_attention(pg, cin, cout),
            "a2": init_attention(pg, cout, cout)}


def double_conv_fwd(p, x):
    return attention_fwd(p["a2"], attention_fwd(p["a1"], x))


def init_down(pg, cin, cout):
    return init_double_conv(pg, cin, cout)


def down_fwd(p, x):
    return double_conv_fwd(p, maxpool2d(x, 2, 2))


# ---------------------------------- GCN / GloRe ------------------------------
def init_gcn(pg, num_state, num_node):
    w1 = pg.normal((num_node, num_node), num_node ** -0.5)
    b1 = pg.normal((num_node,), 0.02)
    w2 = pg.normal((num_state, num_state), num_state ** -0.5)
    ones_n = jnp.ones((num_node,), jnp.float32)
    zeros_n = jnp.zeros((num_node,), jnp.float32)
    # conv1 + residual folded:  h = x @ (w1.T + I) + b1  (LeakyReLU in epilogue)
    w1res = w1.T + jnp.eye(num_node, dtype=jnp.float32)
    return {"w1res": make_pack(w1res, ones_n, b1),
            "w2": w2.astype(jnp.bfloat16),
            "ones_n": ones_n, "zeros_n": zeros_n}


def gcn_fwd(p, x):
    """x: [num_state, num_node] (bf16)."""
    h = matmul_packed(x, p["w1res"], act="leaky")
    # conv2 (no bias): out = W2 @ relu_h ; weight as LHS, all dims 128-aligned.
    return fused_matmul(p["w2"], h, p["ones_n"], p["zeros_n"], act="none")


def init_glore(pg, num_in, num_mid):
    num_s, num_n = int(2 * num_mid), int(1 * num_mid)
    cs = init_conv_bn(pg, num_in, num_s, 1)
    cp = init_conv_bn(pg, num_in, num_n, 1)
    cr = init_conv_bn(pg, num_in, num_n, 1)
    return {"num_s": num_s, "num_n": num_n,
            "spr": pack_concat([cs, cp, cr]),   # state/proj/reproj fused
            "gcn1": init_gcn(pg, num_s, num_n),
            "gcn2": init_gcn(pg, num_s, num_n),
            # fc_2 (no bias) + blocker BatchNorm(eps=1e-5) folded together
            "fc2": pack_conv(init_conv_bn(pg, num_s, num_in, 1,
                                          bias=False, eps=1e-5))}


def glore_fwd(p, x):
    B, H, W, _ = x.shape
    L = H * W
    num_s, num_n = p["num_s"], p["num_n"]
    spr = conv2d(x, p["spr"], act="relu")           # one fused 1x1 conv
    xs = spr[..., :num_s]
    xp = spr[..., num_s:num_s + num_n]
    xr = spr[..., num_s + num_n:]
    inv_l = jnp.full((num_n,), 1.0 / L, jnp.float32)
    zeros_n = jnp.zeros((num_n,), jnp.float32)
    ones_L = jnp.ones((L,), jnp.float32)
    zeros_L = jnp.zeros((L,), jnp.float32)
    outs = []
    for b in range(B):
        xs2 = xs[b].reshape(L, num_s).T     # [num_s, L] (matches torch .view)
        xp2 = xp[b].reshape(L, num_n)       # [L, num_n]
        xr2 = xr[b].reshape(L, num_n).T     # [num_n, L]
        # bmm(x_state, x_proj^T) * (1/L) -- 1/L folded into the epilogue scale
        n_state = fused_matmul(xs2, xp2, inv_l, zeros_n, act="none")
        rel = gcn_fwd(p["gcn2"], gcn_fwd(p["gcn1"], n_state))
        st = fused_matmul(rel, xr2, ones_L, zeros_L, act="none")   # [num_s, L]
        outs.append(st.T.reshape(1, H, W, num_s))
    x_state = outs[0] if B == 1 else jnp.concatenate(outs, axis=0)
    y = conv2d(x_state, p["fc2"], act="none")
    return x + y


# --------------------------------- MGR module --------------------------------
def init_mgr(pg, cin, cout):
    cout = int(cout)
    c0_1 = init_conv_bn(pg, cin, cout, 3)
    glou0 = init_glore(pg, cout, cout)
    c1_1 = init_conv_bn(pg, cin, cout, 3)
    c1_2 = init_conv_bn(pg, cout, cout, 3)
    glou1 = init_glore(pg, cout, cout)
    c2_1 = init_conv_bn(pg, cin, cout, 3)
    c2_2 = init_conv_bn(pg, cout, cout, 3)
    glou2 = init_glore(pg, cout, cout / 2)
    c3_1 = init_conv_bn(pg, cin, cout, 3)
    c3_2 = init_conv_bn(pg, cout, cout, 3)
    glou3 = init_glore(pg, cout, cout / 2)
    f1 = init_conv_bn(pg, 4 * cout, cin, 1)
    return {"cout": cout,
            # four branch-entry 3x3 convs on the same input fused into one call
            "conv_in": pack_concat([c0_1, c1_1, c2_1, c3_1]),
            "conv1_2": pack_conv(c1_2),
            "conv2_2": pack_conv(c2_2),
            "conv3_2": pack_conv(c3_2),
            "glou0": glou0, "glou1": glou1, "glou2": glou2, "glou3": glou3,
            "f1": pack_conv(f1)}


def mgr_fwd(p, x):
    _, H, W, _ = x.shape
    co = p["cout"]
    call = conv2d(x, p["conv_in"], padding=1, act="relu")   # [B,H,W,4*cout]
    x0 = call[..., :co]
    b1 = call[..., co:2 * co]
    b2 = call[..., 2 * co:3 * co]
    b3 = call[..., 3 * co:]
    g0 = glore_fwd(p["glou0"], x0)
    x1 = conv2d(maxpool2d(b1, 2, 2), p["conv1_2"], padding=1, act="relu")
    g1 = glore_fwd(p["glou1"], x1)
    l1 = upsample_bilinear_align(g1, H, W)
    x2 = conv2d(maxpool2d(b2, 3, 3), p["conv2_2"], padding=1, act="relu")
    g2 = glore_fwd(p["glou2"], x2)
    l2 = upsample_bilinear_align(g2, H, W)
    x3 = conv2d(maxpool2d(b3, 5, 5), p["conv3_2"], padding=1, act="relu")
    g3 = glore_fwd(p["glou3"], x3)
    l3 = upsample_bilinear_align(g3, H, W)
    cat = jnp.concatenate([g0, l1, l2, l3], axis=-1)
    return conv2d(cat, p["f1"], act="relu")


# --------------------------------- Up path -----------------------------------
def init_multiscale(pg, cin):
    sub = cin // 4
    return {"s0": pack_conv(init_conv_bn(pg, cin, sub, 1, eps=1e-5)),
            "s1": pack_conv(init_conv_bn(pg, cin, sub, 3, eps=1e-5)),
            "s2": pack_conv(init_conv_bn(pg, cin, sub, 3, eps=1e-5)),
            "s3": pack_conv(init_conv_bn(pg, cin, sub, 1, eps=1e-5))}


def multiscale_fwd(p, x):
    s0 = conv2d(x, p["s0"], act="relu")
    s1 = conv2d(x, p["s1"], padding=1, act="relu")
    s2 = conv2d(x, p["s2"], padding=3, act="relu", dilation=3)
    s3 = conv2d(maxpool2d(x, 3, 1, padding=1), p["s3"], act="relu")
    return jnp.concatenate([s0, s1, s2, s3], axis=-1)


def init_up(pg, cin, cout):
    w = pg.normal((cin, 2, 2, cout), (4 * cin) ** -0.5)  # ConvTranspose2d(2,2)
    b = pg.normal((cout,), 0.02)
    up = make_pack(w.reshape(cin, 4 * cout),
                   jnp.ones((4 * cout,), jnp.float32), jnp.tile(b, 4))
    return {"up": up, "cout": cout,
            "ms": init_multiscale(pg, cout),
            "conv": init_double_conv(pg, cin, cout)}


def conv_transpose2x2(x, pack, cout):
    """ConvTranspose2d(kernel=2, stride=2) as a Pallas matmul + reshuffle."""
    B, H, W, Cin = x.shape
    y = matmul_packed(x.reshape(B * H * W, Cin), pack, act="none")
    y = y.reshape(B, H, W, 2, 2, cout).transpose(0, 1, 3, 2, 4, 5)
    return y.reshape(B, 2 * H, 2 * W, cout)


def up_fwd(p, x1, x2):
    x1 = conv_transpose2x2(x1, p["up"], p["cout"])
    dy = x2.shape[1] - x1.shape[1]
    dx = x2.shape[2] - x1.shape[2]
    if dy or dx:
        x1 = jnp.pad(x1, ((0, 0), (dy // 2, dy - dy // 2),
                          (dx // 2, dx - dx // 2), (0, 0)))
    ms = multiscale_fwd(p["ms"], x2)
    return double_conv_fwd(p["conv"], jnp.concatenate([ms, x1], axis=-1))


def init_outconv(pg, cin, cout):
    w = pg.normal((cin, cout), cin ** -0.5)
    b = pg.normal((cout,), 0.02)
    return make_pack(w, jnp.ones((cout,), jnp.float32), b)


def outconv_fwd(p, x):
    B, H, W, C = x.shape
    y = matmul_packed(x.reshape(B * H * W, C), p, act="none",
                      out_dtype=jnp.float32)
    return y.reshape(B, H, W, p["N"])


# --------------------------------- AMGUnet -----------------------------------
def init_amgunet(pg, n_channels, n_classes):
    return {"inc": init_double_conv(pg, n_channels, 64),
            "down1": init_down(pg, 64, 128),
            "down2": init_down(pg, 128, 256),
            "down3": init_down(pg, 256, 512),
            "down4": init_down(pg, 512, 1024),
            "mgb": init_mgr(pg, 1024, 2048),
            "up1": init_up(pg, 1024, 512),
            "up2": init_up(pg, 512, 256),
            "up3": init_up(pg, 256, 128),
            "up4": init_up(pg, 128, 64),
            "outc": init_outconv(pg, 64, n_classes)}


def amgunet_fwd(p, x_nchw):
    # layout: NCHW in / NCHW out, NHWC (bf16) internally.
    x = jnp.transpose(x_nchw, (0, 2, 3, 1)).astype(jnp.bfloat16)
    x1 = double_conv_fwd(p["inc"], x)
    x2 = down_fwd(p["down1"], x1)
    x3 = down_fwd(p["down2"], x2)
    x4 = down_fwd(p["down3"], x3)
    x5 = down_fwd(p["down4"], x4)
    x5 = mgr_fwd(p["mgb"], x5)
    x = up_fwd(p["up1"], x5, x4)
    x = up_fwd(p["up2"], x, x3)
    x = up_fwd(p["up3"], x, x2)
    x = up_fwd(p["up4"], x, x1)
    out = outconv_fwd(p["outc"], x)          # fuse_mode=False branch
    return jnp.transpose(out, (0, 3, 1, 2))


if __name__ == "__main__":
    # Smallest spatial size consistent with the module: after 4 max-pools the
    # bottleneck must be >= 5x5 for the MGR 5x5 / stride-5 max-pool, so H=W=80.
    B, C, H, W = 1, 3, 80, 80
    N_CLASSES = 2

    x = jax.random.normal(jax.random.PRNGKey(0), (B, C, H, W), jnp.float32)
    params = init_amgunet(ParamGen(seed=0), n_channels=C, n_classes=N_CLASSES)

    out = amgunet_fwd(params, x)
    out = jax.block_until_ready(out)

    assert out.shape == (B, N_CLASSES, H, W), out.shape
    assert bool(jnp.all(jnp.isfinite(out)))
    print("KERNEL_OK")
</pallas_src>

<mosaic_0001>
module attributes {stable_mosaic.version = 11 : i64} {
  func.func @_mm_kernel_single(%arg0: i32, %arg1: i32, %arg2: memref<640x128xbf16, #tpu.memory_space<vmem>>, %arg3: memref<128x256xbf16, #tpu.memory_space<vmem>>, %arg4: memref<1x256xf32, #tpu.memory_space<vmem>>, %arg5: memref<1x256xf32, #tpu.memory_space<vmem>>, %arg6: memref<640x256xbf16, #tpu.memory_space<vmem>>) attributes {dimension_semantics = [#tpu.dimension_semantics<parallel>, #tpu.dimension_semantics<parallel>], iteration_bounds = array<i64: 10, 1>, scalar_prefetch = 0 : i64, scratch_operands = 0 : i64, tpu.core_type = #tpu.core_type<tc>, window_params = [{transform_indices = @transform_0, window_bounds = array<i64: 640, 128>}, {transform_indices = @transform_1, window_bounds = array<i64: 128, 256>}, {transform_indices = @transform_2, window_bounds = array<i64: 1, 256>}, {transform_indices = @transform_3, window_bounds = array<i64: 1, 256>}, {transform_indices = @transform_4, window_bounds = array<i64: 640, 256>}]} {
    %c0 = arith.constant 0 : index
    %c0_0 = arith.constant 0 : index
    %0 = vector.load %arg2[%c0, %c0_0] : memref<640x128xbf16, #tpu.memory_space<vmem>>, vector<640x128xbf16>
    %c0_1 = arith.constant 0 : index
    %c0_2 = arith.constant 0 : index
    %1 = vector.load %arg3[%c0_1, %c0_2] : memref<128x256xbf16, #tpu.memory_space<vmem>>, vector<128x256xbf16>
    %cst = arith.constant dense<0.000000e+00> : vector<640x256xf32>
    %2 = tpu.matmul %0, %1, %cst {dimension_numbers = #tpu.dot_dimension_numbers<[1], [0], [0], [1], [0, 0, 1, 1], [], []>} : vector<640x128xbf16>, vector<128x256xbf16>, vector<640x256xf32> -> vector<640x256xf32>
    %c0_3 = arith.constant 0 : index
    %c0_4 = arith.constant 0 : index
    %3 = vector.load %arg4[%c0_3, %c0_4] : memref<1x256xf32, #tpu.memory_space<vmem>>, vector<1x256xf32>
    %4 = vector.broadcast %3 : vector<1x256xf32> to vector<640x256xf32>
    %5 = arith.mulf %2, %4 : vector<640x256xf32>
    %c0_5 = arith.constant 0 : index
    %c0_6 = arith.constant 0 : index
    %6 = vector.load %arg5[%c0_5, %c0_6] : memref<1x256xf32, #tpu.memory_space<vmem>>, vector<1x256xf32>
    %7 = vector.broadcast %6 : vector<1x256xf32> to vector<640x256xf32>
    %8 = arith.addf %5, %7 : vector<640x256xf32>
    %cst_7 = arith.constant 0.000000e+00 : f32
    %9 = vector.broadcast %cst_7 : f32 to vector<640x256xf32>
    %10 = arith.maximumf %8, %9 : vector<640x256xf32>
    %11 = arith.truncf %10 : vector<640x256xf32> to vector<640x256xbf16>
    %c0_8 = arith.constant 0 : index
    %c0_9 = arith.constant 0 : index
    %12 = vector.load %arg6[%c0_8, %c0_9] : memref<640x256xbf16, #tpu.memory_space<vmem>>, vector<640x256xbf16>
    tpu.vector_store %arg6[%c0_8, %c0_9], %11 {strides = array<i32>} : memref<640x256xbf16, #tpu.memory_space<vmem>>, vector<640x256xbf16>,
    return
  }
  func.func @transform_0(%arg0: i32, %arg1: i32) -> (i32, i32) {
    %c0_i32 = arith.constant 0 : i32
    %c0_i32_0 = arith.constant 0 : i32
    return %arg0, %c0_i32 : i32, i32
  }
  func.func @transform_1(%arg0: i32, %arg1: i32) -> (i32, i32) {
    %c0_i32 = arith.constant 0 : i32
    %c0_i32_0 = arith.constant 0 : i32
    return %c0_i32, %arg1 : i32, i32
  }
  func.func @transform_2(%arg0: i32, %arg1: i32) -> (i32, i32) {
    %c0_i32 = arith.constant 0 : i32
    %c0_i32_0 = arith.constant 0 : i32
    return %c0_i32, %arg1 : i32, i32
  }
  func.func @transform_3(%arg0: i32, %arg1: i32) -> (i32, i32) {
    %c0_i32 = arith.constant 0 : i32
    %c0_i32_0 = arith.constant 0 : i32
    return %c0_i32, %arg1 : i32, i32
  }
  func.func @transform_4(%arg0: i32, %arg1: i32) -> (i32, i32) {
    %c0_i32 = arith.constant 0 : i32
    return %arg0, %arg1 : i32, i32
  }
}

</mosaic_0001>

<llo_original>
// kernel: _padded_matmul.1
$region0: #{_padded_matmul.1}
  #allocation0 [shape = 'u32[]', space=smem, size = 0x4, offset = 0x4, fixed_abs, tag = 'smem constant byte address 0x4 - core index']
  #allocation1 [shape = 'u32[72,128]{1,0:T(1,128)}', space=vmem, size = 0x9000, scoped, tag = 'internal scratch']
  %s0 = inlined_call_operand.hbm [shape: bf16[6400,128], index: 0, kind: input, shape index: {}]
  %s1 = inlined_call_operand.hbm [shape: bf16[128,256], index: 1, kind: input, shape index: {}]
  %s2 = inlined_call_operand.hbm [shape: f32[1,256], index: 2, kind: input, shape index: {}]
  %s3 = inlined_call_operand.hbm [shape: f32[1,256], index: 3, kind: input, shape index: {}]
  %s4 = inlined_call_operand.hbm [shape: bf16[6400,256], index: 4, kind: output, shape index: {}]
  %s5 = sld [smem:[#allocation0]]
  $region65: #{_padded_matmul.1} parent=0
    _
  %s7 = ssub.s32 1, %s5
  %s8 = scalar_select 0, %s7, %s5
  $region1: #{_padded_matmul.1} parent=0
    #allocation2 [shape = 'u8[327680]{0}', space=vmem, size = 0x50000, scoped, tag = 'input window, operand 0']
    #allocation3 [shape = 's32[2]{0}', space=sflag, size = 0x8, scoped, tag = 'scoped memory for _padded_matmul.1']
    #allocation4 [shape = 's32[2]{0}', space=sflag, size = 0x8, scoped, tag = 'scoped memory for _padded_matmul.1']
    #allocation5 [shape = 'u8[65536]{0}', space=vmem, size = 0x10000, scoped, tag = 'input window, operand 1, single buffered']
    #allocation6 [shape = 's32[1]{0}', space=sflag, size = 0x4, scoped, tag = 'scoped memory for _padded_matmul.1']
    #allocation7 [shape = 'u8[1024]{0}', space=vmem, size = 0x400, scoped, tag = 'input window, operand 2, single buffered']
    #allocation8 [shape = 'u8[1024]{0}', space=vmem, size = 0x400, scoped, tag = 'input window, operand 3, single buffered']
    #allocation9 [shape = 's32[1]{0}', space=sflag, size = 0x4, scoped, tag = 'scoped memory for _padded_matmul.1']
    #allocation10 [shape = 'u8[655360]{0}', space=vmem, size = 0xa0000, scoped, tag = 'output window, operand 0']
    %9 = vsyncpa [#allocation3], 0
    %s10 = scalar_lea.sflag [#allocation3], 1
    %11 = vsyncpa %s10, 0
    %12 = vsyncpa [#allocation6], 0
    %13 = vsyncpa [#allocation9], 0
    %14 = vsyncpa [#allocation4], 0
    %s15 = scalar_lea.sflag [#allocation4], 1
    %16 = vsyncpa %s15, 0
    loop: start=0, step=1, limit=12
    $region2: #{_padded_matmul.1} parent=1 // loop_pre_header
      _
    $region3: #{_padded_matmul.1} parent=1 // loop_header
      %s18 = sphi 0, %s22
      %p19 = scmp.ge.s32.totalorder %s18, 12
      %s25 = sphi 0, %s37
      %s26 = sphi 0, %s33
      %s27 = sphi 0, %s25
      %s28 = sphi 0, %s26
      %s29 = sphi 0, %s27
      %s30 = sphi 0, %s28
      %s40 = sphi 0, %s42
      %s43 = sphi 0, %s40
      %s44 = sphi 0, %s43
      %s60 = sphi 0, %s44
      %s66 = sphi 0, %s68
      %s69 = sphi 0, %s66
      %s70 = sphi 0, %s69
      %s86 = sphi 0, %s70
      %s92 = sphi 0, %s94
      %s95 = sphi 0, %s92
      %s96 = sphi 0, %s95
      %s112 = sphi 0, %s96
      %s118 = sphi 0, %s120
      %s121 = sphi 0, %s118
      %s122 = sphi 0, %s121
      %s138 = sphi 0, %s122
      %s146 = sphi 0, %s148
      %s149 = sphi 0, %s146
      %s150 = sphi 0, %s149
      %s166 = sphi 0, %s150
    $region4: #{_padded_matmul.1} parent=1 // loop_header_branch
      %21 = sbr.rel (%p19) target = $region8
    $region5: #{_padded_matmul.1} parent=1 // loop_body
      %s23 = ssub.s32 %s18, 1
      %s24 = ssub.s32 %s18, 2
      %s31 = sadd.s32 1, %s26
      %p32 = scmp.ge.s32.totalorder %s31, 1
      %s33 = scalar_select %p32, 0, %s31
      %s34 = sadd.s32 1, %s25
      %s35 = scalar_select %p32, %s34, %s25
      %p36 = scmp.ge.s32.totalorder %s35, 10
      %s37 = scalar_select %p36, 0, %s35
      %s38 = ssub.s32 %s25, %s37
      %p39 = scmp.eq.s32.totalorder %s38, 0
      %s41 = sadd.s32 %s40, 1
      %s42 = scalar_select %p39, %s40, %s41
      %p45 = pneg %p39
      %p46 = scmp.eq.s32.totalorder %s18, 9
      %p47 = por %p45, %p46
      %p48 = scmp.ne.s32.totalorder %s40, %s43
      %p49 = scmp.eq.s32.totalorder %s18, 0
      %p50 = por %p48, %p49
      %p51 = scmp.ne.s32.totalorder %s40, %s43
      %p52 = scmp.eq.s32.totalorder %s23, 9
      %p53 = por %p51, %p52
      %p54 = scmp.ne.s32.totalorder %s43, %s44
      %p55 = scmp.eq.s32.totalorder %s23, 0
      %p56 = por %p54, %p55
      %p57 = scmp.ne.s32.totalorder %s43, %s44
      %p58 = scmp.eq.s32.totalorder %s24, 9
      %p59 = por %p57, %p58
      %p61 = scmp.ne.s32.totalorder %s44, %s60
      %p62 = scmp.eq.s32.totalorder %s24, 0
      %p63 = por %p61, %p62
      %s64 = ssub.s32 %s26, %s33
      %p65 = scmp.eq.s32.totalorder %s64, 0
      %s67 = sadd.s32 %s66, 1
      %s68 = scalar_select %p65, %s66, %s67
      %p71 = pneg %p65
      %p72 = scmp.eq.s32.totalorder %s18, 9
      %p73 = por %p71, %p72
      %p74 = scmp.ne.s32.totalorder %s66, %s69
      %p75 = scmp.eq.s32.totalorder %s18, 0
      %p76 = por %p74, %p75
      %p77 = scmp.ne.s32.totalorder %s66, %s69
      %p78 = scmp.eq.s32.totalorder %s23, 9
      %p79 = por %p77, %p78
      %p80 = scmp.ne.s32.totalorder %s69, %s70
      %p81 = scmp.eq.s32.totalorder %s23, 0
      %p82 = por %p80, %p81
      %p83 = scmp.ne.s32.totalorder %s69, %s70
      %p84 = scmp.eq.s32.totalorder %s24, 9
      %p85 = por %p83, %p84
      %p87 = scmp.ne.s32.totalorder %s70, %s86
      %p88 = scmp.eq.s32.totalorder %s24, 0
      %p89 = por %p87, %p88
      %s90 = ssub.s32 %s26, %s33
      %p91 = scmp.eq.s32.totalorder %s90, 0
      %s93 = sadd.s32 %s92, 1
      %s94 = scalar_select %p91, %s92, %s93
      %p97 = pneg %p91
      %p98 = scmp.eq.s32.totalorder %s18, 9
      %p99 = por %p97, %p98
      %p100 = scmp.ne.s32.totalorder %s92, %s95
      %p101 = scmp.eq.s32.totalorder %s18, 0
      %p102 = por %p100, %p101
      %p103 = scmp.ne.s32.totalorder %s92, %s95
      %p104 = scmp.eq.s32.totalorder %s23, 9
      %p105 = por %p103, %p104
      %p106 = scmp.ne.s32.totalorder %s95, %s96
      %p107 = scmp.eq.s32.totalorder %s23, 0
      %p108 = por %p106, %p107
      %p109 = scmp.ne.s32.totalorder %s95, %s96
      %p110 = scmp.eq.s32.totalorder %s24, 9
      %p111 = por %p109, %p110
      %p113 = scmp.ne.s32.totalorder %s96, %s112
      %p114 = scmp.eq.s32.totalorder %s24, 0
      %p115 = por %p113, %p114
      %s116 = ssub.s32 %s26, %s33
      %p117 = scmp.eq.s32.totalorder %s116, 0
      %s119 = sadd.s32 %s118, 1
      %s120 = scalar_select %p117, %s118, %s119
      %p123 = pneg %p117
      %p124 = scmp.eq.s32.totalorder %s18, 9
      %p125 = por %p123, %p124
      %p126 = scmp.ne.s32.totalorder %s118, %s121
      %p127 = scmp.eq.s32.totalorder %s18, 0
      %p128 = por %p126, %p127
      %p129 = scmp.ne.s32.totalorder %s118, %s121
      %p130 = scmp.eq.s32.totalorder %s23, 9
      %p131 = por %p129, %p130
      %p132 = scmp.ne.s32.totalorder %s121, %s122
      %p133 = scmp.eq.s32.totalorder %s23, 0
      %p134 = por %p132, %p133
      %p135 = scmp.ne.s32.totalorder %s121, %s122
      %p136 = scmp.eq.s32.totalorder %s24, 9
      %p137 = por %p135, %p136
      %p139 = scmp.ne.s32.totalorder %s122, %s138
      %p140 = scmp.eq.s32.totalorder %s24, 0
      %p141 = por %p139, %p140
      %s142 = ssub.s32 %s25, %s37
      %s143 = ssub.s32 %s26, %s33
      %s144 = sor.u32 %s142, %s143
      %p145 = scmp.eq.s32.totalorder %s144, 0
      %s147 = sadd.s32 %s146, 1
      %s148 = scalar_select %p145, %s146, %s147
      %p151 = pneg %p145
      %p152 = scmp.eq.s32.totalorder %s18, 9
      %p153 = por %p151, %p152
      %p154 = scmp.ne.s32.totalorder %s146, %s149
      %p155 = scmp.eq.s32.totalorder %s18, 0
      %p156 = por %p154, %p155
      %p157 = scmp.ne.s32.totalorder %s146, %s149
      %p158 = scmp.eq.s32.totalorder %s23, 9
      %p159 = por %p157, %p158
      %p160 = scmp.ne.s32.totalorder %s149, %s150
      %p161 = scmp.eq.s32.totalorder %s23, 0
      %p162 = por %p160, %p161
      %p163 = scmp.ne.s32.totalorder %s149, %s150
      %p164 = scmp.eq.s32.totalorder %s24, 9
      %p165 = por %p163, %p164
      %p167 = scmp.ne.s32.totalorder %s150, %s166
      %p168 = scmp.eq.s32.totalorder %s24, 0
      %p169 = por %p167, %p168
      %p170 = scmp.le.s32.totalorder 1, %s18
      %p171 = scmp.lt.s32.totalorder %s18, 11
      %p172 = pnand %p170, %p171
      %p173 = pneg %p172
      // Predicated region
      $region9: #{_padded_matmul.1} parent=5 // pred_check
        _
      $region10: #{_padded_matmul.1} parent=5 // pred_check_branch
        %175 = sbr.rel (%p172) target = $region12
      $region11: #{_padded_matmul.1} parent=5 // pred_region
        %s176 = ssub.s32 %s18, 1
        // Predicated region
        $region13: #{_padded_matmul.1} parent=11 // pred_check
          %p177 = pneg %p82
        $region14: #{_padded_matmul.1} parent=11 // pred_check_branch
          %179 = sbr.rel (%p177) target = $region16
        $region15: #{_padded_matmul.1} parent=11 // pred_region
          %s180 = smul.u32 2, %s28
          %182 = vsyncadd [#allocation6], 0
          %s183 = smul.addr %s180, 4
          %s184 = scalar_lea.hbm %s1, %s183
          %s185 = sshll.u32 %s184, 4
          %s186 = int_to_ptr.hbm [resolvable:$true] %s185
          %s187 = sshll.u32 [#allocation5], 4
          %s188 = int_to_ptr.vmem [resolvable:$true] %s187
          %193 = dma.hbm_to_vmem [thread:$0]  %s186, 2048, %s188, [#allocation6], 128, 128, 8
        $region16: #{_padded_matmul.1} parent=11 // pred_fallthru
          _
        // Predicated region
        $region17: #{_padded_matmul.1} parent=11 // pred_check
          %p194 = pneg %p108
        $region18: #{_padded_matmul.1} parent=11 // pred_check_branch
          %196 = sbr.rel (%p194) target = $region20
        $region19: #{_padded_matmul.1} parent=11 // pred_region
          %s197 = smul.u32 2, %s28
          %199 = vsyncadd [#allocation6], 0
          %s200 = scalar_lea.hbm %s2, %s197
          %s202 = sshll.u32 %s200, 4
          %s203 = int_to_ptr.hbm [resolvable:$true] %s202
          %s204 = sshll.u32 [#allocation7], 4
          %s205 = int_to_ptr.vmem [resolvable:$true] %s204
          %207 = dma.hbm_to_vmem [thread:$0]  %s203, 32, %s205, [#allocation6]
        $region20: #{_padded_matmul.1} parent=11 // pred_fallthru
          _
        // Predicated region
        $region21: #{_padded_matmul.1} parent=11 // pred_check
          %p208 = pneg %p134
        $region22: #{_padded_matmul.1} parent=11 // pred_check_branch
          %210 = sbr.rel (%p208) target = $region24
        $region23: #{_padded_matmul.1} parent=11 // pred_region
          %s211 = smul.u32 2, %s28
          %213 = vsyncadd [#allocation9], 0
          %s214 = scalar_lea.hbm %s3, %s211
          %s216 = sshll.u32 %s214, 4
          %s217 = int_to_ptr.hbm [resolvable:$true] %s216
          %s218 = sshll.u32 [#allocation8], 4
          %s219 = int_to_ptr.vmem [resolvable:$true] %s218
          %221 = dma.hbm_to_vmem [thread:$0]  %s217, 32, %s219, [#allocation9]
        $region24: #{_padded_matmul.1} parent=11 // pred_fallthru
          _
      $region12: #{_padded_matmul.1} parent=5 // pred_fallthru
        _
      %p222 = scmp.lt.s32.totalorder %s18, 10
      // Predicated region
      $region25: #{_padded_matmul.1} parent=5 // pred_check
        %p223 = pneg %p222
      $region26: #{_padded_matmul.1} parent=5 // pred_check_branch
        %225 = sbr.rel (%p223) target = $region28
      $region27: #{_padded_matmul.1} parent=5 // pred_region
        // Predicated region
        $region29: #{_padded_matmul.1} parent=27 // pred_check
          %p226 = pneg %p50
        $region30: #{_padded_matmul.1} parent=27 // pred_check_branch
          %228 = sbr.rel (%p226) target = $region32
        $region31: #{_padded_matmul.1} parent=27 // pred_region
          %s229 = sand.u32 %s40, 1
          %s230 = scalar_lea.sflag [#allocation3], %s229
          %s231 = sand.u32 %s40, 1
          %s232 = smul.addr %s231, 320
          %s233 = scalar_lea.vmem [#allocation2], %s232
          %s234 = smul.u32 80, %s25
          %236 = vsyncadd %s230, 0
          %s237 = smul.addr %s234, 4
          %s238 = scalar_lea.hbm %s0, %s237
          %s239 = sshll.u32 %s238, 4
          %s240 = int_to_ptr.hbm [resolvable:$true] %s239
          %s241 = sshll.u32 %s233, 4
          %s242 = int_to_ptr.vmem [resolvable:$true] %s241
          %247 = dma.hbm_to_vmem [thread:$0]  %s240, 5120, %s242, %s230, 64, 64, 4
        $region32: #{_padded_matmul.1} parent=27 // pred_fallthru
          _
      $region28: #{_padded_matmul.1} parent=5 // pred_fallthru
        _
      %p248 = scmp.le.s32.totalorder 1, %s18
      %p249 = scmp.lt.s32.totalorder %s18, 11
      %p250 = pnand %p248, %p249
      %p251 = pneg %p250
      // Predicated region
      $region33: #{_padded_matmul.1} parent=5 // pred_check
        _
      $region34: #{_padded_matmul.1} parent=5 // pred_check_branch
        %253 = sbr.rel (%p250) target = $region36
      $region35: #{_padded_matmul.1} parent=5 // pred_region
        %s254 = ssub.s32 %s18, 1
        %s255 = sand.u32 %s43, 1
        %s256 = scalar_lea.sflag [#allocation3], %s255
        %s257 = sand.u32 %s43, 1
        %s258 = smul.addr %s257, 320
        %s259 = scalar_lea.vmem [#allocation2], %s258
        // Predicated region
        $region37: #{_padded_matmul.1} parent=35 // pred_check
          %p260 = pneg %p56
        $region38: #{_padded_matmul.1} parent=35 // pred_check_branch
          %262 = sbr.rel (%p260) target = $region40
        $region39: #{_padded_matmul.1} parent=35 // pred_region
          %264 = dma.done %s256, 5120
        $region40: #{_padded_matmul.1} parent=35 // pred_fallthru
          _
        // Predicated region
        $region41: #{_padded_matmul.1} parent=35 // pred_check
          %p265 = pneg %p82
        $region42: #{_padded_matmul.1} parent=35 // pred_check_branch
          %267 = sbr.rel (%p265) target = $region44
        $region43: #{_padded_matmul.1} parent=35 // pred_region
          %269 = dma.done [#allocation6], 2048
        $region44: #{_padded_matmul.1} parent=35 // pred_fallthru
          _
        // Predicated region
        $region45: #{_padded_matmul.1} parent=35 // pred_check
          %p270 = pneg %p108
        $region46: #{_padded_matmul.1} parent=35 // pred_check_branch
          %272 = sbr.rel (%p270) target = $region48
        $region47: #{_padded_matmul.1} parent=35 // pred_region
          %274 = dma.done [#allocation6], 32
        $region48: #{_padded_matmul.1} parent=35 // pred_fallthru
          _
        // Predicated region
        $region49: #{_padded_matmul.1} parent=35 // pred_check
          %p275 = pneg %p134
        $region50: #{_padded_matmul.1} parent=35 // pred_check_branch
          %277 = sbr.rel (%p275) target = $region52
        $region51: #{_padded_matmul.1} parent=35 // pred_region
          %279 = dma.done [#allocation9], 32
        $region52: #{_padded_matmul.1} parent=35 // pred_fallthru
          _
        %s280 = sand.u32 %s43, 1
        %s281 = scalar_lea.sflag [#allocation3], %s280
        %s282 = sand.u32 %s43, 1
        %s283 = smul.addr %s282, 320
        %s284 = scalar_lea.vmem [#allocation2], %s283
        %p285 = pneg %p56
        %p286 = pneg %p53
        %p287 = pneg %p82
        %p288 = pneg %p79
        %p289 = pneg %p108
        %p290 = pneg %p105
        %p291 = pneg %p134
        %p292 = pneg %p131
        %p293 = pneg %p162
        %p294 = pneg %p159
        %s295 = sand.u32 %s149, 1
        %s296 = scalar_lea.sflag [#allocation4], %s295
        %s297 = sand.u32 %s149, 1
        %s298 = smul.addr %s297, 640
        %s299 = scalar_lea.vmem [#allocation10], %s298
        %s300 = smul.u32 80, %s27
        %s301 = smul.u32 2, %s28
        %s302 = smul.u32 2, %s28
        %s303 = smul.u32 2, %s28
        %s304 = smul.u32 80, %s27
        %s305 = smul.u32 2, %s28
        %v306 = vld [vmem:[%s259] sm:$0xf]
        %v307 = vld [vmem:[%s259 + $0x4] sm:$0xf]
        %v308 = vld [vmem:[%s259 + $0x8] sm:$0xf]
        %v309 = vld [vmem:[%s259 + $0xc] sm:$0xf]
        %v310 = vld [vmem:[%s259 + $0x10] sm:$0xf]
        %v311 = vld [vmem:[%s259 + $0x14] sm:$0xf]
        %v312 = vld [vmem:[%s259 + $0x18] sm:$0xf]
        %v313 = vld [vmem:[%s259 + $0x1c] sm:$0xf]
        %v314 = vld [vmem:[%s259 + $0x20] sm:$0xf]
        %v315 = vld [vmem:[%s259 + $0x24] sm:$0xf]
        %v316 = vld [vmem:[%s259 + $0x28] sm:$0xf]
        %v317 = vld [vmem:[%s259 + $0x2c] sm:$0xf]
        %v318 = vld [vmem:[%s259 + $0x30] sm:$0xf]
        %v319 = vld [vmem:[%s259 + $0x34] sm:$0xf]
        %v320 = vld [vmem:[%s259 + $0x38] sm:$0xf]
        %v321 = vld [vmem:[%s259 + $0x3c] sm:$0xf]
        %v322 = vld [vmem:[%s259 + $0x40] sm:$0xf]
        %v323 = vld [vmem:[%s259 + $0x44] sm:$0xf]
        %v324 = vld [vmem:[%s259 + $0x48] sm:$0xf]
        %v325 = vld [vmem:[%s259 + $0x4c] sm:$0xf]
        %v326 = vld [vmem:[%s259 + $0x50] sm:$0xf]
        %v327 = vld [vmem:[%s259 + $0x54] sm:$0xf]
        %v328 = vld [vmem:[%s259 + $0x58] sm:$0xf]
        %v329 = vld [vmem:[%s259 + $0x5c] sm:$0xf]
        %v330 = vld [vmem:[%s259 + $0x60] sm:$0xf]
        %v331 = vld [vmem:[%s259 + $0x64] sm:$0xf]
        %v332 = vld [vmem:[%s259 + $0x68] sm:$0xf]
        %v333 = vld [vmem:[%s259 + $0x6c] sm:$0xf]
        %v334 = vld [vmem:[%s259 + $0x70] sm:$0xf]
        %v335 = vld [vmem:[%s259 + $0x74] sm:$0xf]
        %v336 = vld [vmem:[%s259 + $0x78] sm:$0xf]
        %v337 = vld [vmem:[%s259 + $0x7c] sm:$0xf]
        %v338 = vld [vmem:[%s259 + $0x80] sm:$0xf]
        %v339 = vld [vmem:[%s259 + $0x84] sm:$0xf]
        %v340 = vld [vmem:[%s259 + $0x88] sm:$0xf]
        %v341 = vld [vmem:[%s259 + $0x8c] sm:$0xf]
        %v342 = vld [vmem:[%s259 + $0x90] sm:$0xf]
        %v343 = vld [vmem:[%s259 + $0x94] sm:$0xf]
        %v344 = vld [vmem:[%s259 + $0x98] sm:$0xf]
        %v345 = vld [vmem:[%s259 + $0x9c] sm:$0xf]
        %v346 = vld [vmem:[%s259 + $0xa0] sm:$0xf]
        %v347 = vld [vmem:[%s259 + $0xa4] sm:$0xf]
        %v348 = vld [vmem:[%s259 + $0xa8] sm:$0xf]
        %v349 = vld [vmem:[%s259 + $0xac] sm:$0xf]
        %v350 = vld [vmem:[%s259 + $0xb0] sm:$0xf]
        %v351 = vld [vmem:[%s259 + $0xb4] sm:$0xf]
        %v352 = vld [vmem:[%s259 + $0xb8] sm:$0xf]
        %v353 = vld [vmem:[%s259 + $0xbc] sm:$0xf]
        %v354 = vld [vmem:[%s259 + $0xc0] sm:$0xf]
        %v355 = vld [vmem:[%s259 + $0xc4] sm:$0xf]
        %v356 = vld [vmem:[%s259 + $0xc8] sm:$0xf]
        %v357 = vld [vmem:[%s259 + $0xcc] sm:$0xf]
        %v358 = vld [vmem:[%s259 + $0xd0] sm:$0xf]
        %v359 = vld [vmem:[%s259 + $0xd4] sm:$0xf]
        %v360 = vld [vmem:[%s259 + $0xd8] sm:$0xf]
        %v361 = vld [vmem:[%s259 + $0xdc] sm:$0xf]
        %v362 = vld [vmem:[%s259 + $0xe0] sm:$0xf]
        %v363 = vld [vmem:[%s259 + $0xe4] sm:$0xf]
        %v364 = vld [vmem:[%s259 + $0xe8] sm:$0xf]
        %v365 = vld [vmem:[%s259 + $0xec] sm:$0xf]
        %v366 = vld [vmem:[%s259 + $0xf0] sm:$0xf]
        %v367 = vld [vmem:[%s259 + $0xf4] sm:$0xf]
        %v368 = vld [vmem:[%s259 + $0xf8] sm:$0xf]
        %v369 = vld [vmem:[%s259 + $0xfc] sm:$0xf]
        %v370 = vld [vmem:[%s259 + $0x100] sm:$0xf]
        %v371 = vld [vmem:[%s259 + $0x104] sm:$0xf]
        %v372 = vld [vmem:[%s259 + $0x108] sm:$0xf]
        %v373 = vld [vmem:[%s259 + $0x10c] sm:$0xf]
        %v374 = vld [vmem:[%s259 + $0x110] sm:$0xf]
        %v375 = vld [vmem:[%s259 + $0x114] sm:$0xf]
        %v376 = vld [vmem:[%s259 + $0x118] sm:$0xf]
        %v377 = vld [vmem:[%s259 + $0x11c] sm:$0xf]
        %v378 = vld [vmem:[%s259 + $0x120] sm:$0xf]
        %v379 = vld [vmem:[%s259 + $0x124] sm:$0xf]
        %v380 = vld [vmem:[%s259 + $0x128] sm:$0xf]
        %v381 = vld [vmem:[%s259 + $0x12c] sm:$0xf]
        %v382 = vld [vmem:[%s259 + $0x130] sm:$0xf]
        %v383 = vld [vmem:[%s259 + $0x134] sm:$0xf]
        %v384 = vld [vmem:[%s259 + $0x138] sm:$0xf]
        %v385 = vld [vmem:[%s259 + $0x13c] sm:$0xf]
        %v386 = vld [vmem:[#allocation5] sm:$0xff]
        %v387 = vld [vmem:[#allocation5 + $0x8] sm:$0xff]
        %v388 = vld [vmem:[#allocation5 + $0x10] sm:$0xff]
        %v389 = vld [vmem:[#allocation5 + $0x18] sm:$0xff]
        %v390 = vld [vmem:[#allocation5 + $0x20] sm:$0xff]
        %v391 = vld [vmem:[#allocation5 + $0x28] sm:$0xff]
        %v392 = vld [vmem:[#allocation5 + $0x30] sm:$0xff]
        %v393 = vld [vmem:[#allocation5 + $0x38] sm:$0xff]
        %v394 = vld [vmem:[#allocation5 + $0x40] sm:$0xff]
        %v395 = vld [vmem:[#allocation5 + $0x48] sm:$0xff]
        %v396 = vld [vmem:[#allocation5 + $0x50] sm:$0xff]
        %v397 = vld [vmem:[#allocation5 + $0x58] sm:$0xff]
        %v398 = vld [vmem:[#allocation5 + $0x60] sm:$0xff]
        %v399 = vld [vmem:[#allocation5 + $0x68] sm:$0xff]
        %v400 = vld [vmem:[#allocation5 + $0x70] sm:$0xff]
        %v401 = vld [vmem:[#allocation5 + $0x78] sm:$0xff]
        %v482 = vunpack.c.l.b16 %v306
        %v483 = vunpack.c.l.b16 %v307
        %v484 = vunpack.c.l.b16 %v308
        %v485 = vunpack.c.l.b16 %v309
        %v486 = vunpack.c.l.b16 %v310
        %v487 = vunpack.c.l.b16 %v311
        %v488 = vunpack.c.l.b16 %v312
        %v489 = vunpack.c.l.b16 %v313
        %v490 = vunpack.c.l.b16 %v314
        %v491 = vunpack.c.l.b16 %v315
        %v492 = vunpack.c.l.b16 %v316
        %v493 = vunpack.c.l.b16 %v317
        %v494 = vunpack.c.l.b16 %v318
        %v495 = vunpack.c.l.b16 %v319
        %v496 = vunpack.c.l.b16 %v320
        %v497 = vunpack.c.l.b16 %v321
        %v498 = vunpack.c.l.b16 %v322
        %v499 = vunpack.c.l.b16 %v323
        %v500 = vunpack.c.l.b16 %v324
        %v501 = vunpack.c.l.b16 %v325
        %v502 = vunpack.c.l.b16 %v326
        %v503 = vunpack.c.l.b16 %v327
        %v504 = vunpack.c.l.b16 %v328
        %v505 = vunpack.c.l.b16 %v329
        %v506 = vunpack.c.l.b16 %v330
        %v507 = vunpack.c.l.b16 %v331
        %v508 = vunpack.c.l.b16 %v332
        %v509 = vunpack.c.l.b16 %v333
        %v510 = vunpack.c.l.b16 %v334
        %v511 = vunpack.c.l.b16 %v335
        %v512 = vunpack.c.l.b16 %v336
        %v513 = vunpack.c.l.b16 %v337
        %v514 = vunpack.c.l.b16 %v338
        %v515 = vunpack.c.l.b16 %v339
        %v516 = vunpack.c.l.b16 %v340
        %v517 = vunpack.c.l.b16 %v341
        %v518 = vunpack.c.l.b16 %v342
        %v519 = vunpack.c.l.b16 %v343
        %v520 = vunpack.c.l.b16 %v344
        %v521 = vunpack.c.l.b16 %v345
        %v522 = vunpack.c.l.b16 %v346
        %v523 = vunpack.c.l.b16 %v347
        %v524 = vunpack.c.l.b16 %v348
        %v525 = vunpack.c.l.b16 %v349
        %v526 = vunpack.c.l.b16 %v350
        %v527 = vunpack.c.l.b16 %v351
        %v528 = vunpack.c.l.b16 %v352
        %v529 = vunpack.c.l.b16 %v353
        %v530 = vunpack.c.l.b16 %v354
        %v531 = vunpack.c.l.b16 %v355
        %v532 = vunpack.c.l.b16 %v356
        %v533 = vunpack.c.l.b16 %v357
        %v534 = vunpack.c.l.b16 %v358
        %v535 = vunpack.c.l.b16 %v359
        %v536 = vunpack.c.l.b16 %v360
        %v537 = vunpack.c.l.b16 %v361
        %v538 = vunpack.c.l.b16 %v362
        %v539 = vunpack.c.l.b16 %v363
        %v540 = vunpack.c.l.b16 %v364
        %v541 = vunpack.c.l.b16 %v365
        %v542 = vunpack.c.l.b16 %v366
        %v543 = vunpack.c.l.b16 %v367
        %v544 = vunpack.c.l.b16 %v368
        %v545 = vunpack.c.l.b16 %v369
        %v546 = vunpack.c.l.b16 %v370
        %v547 = vunpack.c.l.b16 %v371
        %v548 = vunpack.c.l.b16 %v372
        %v549 = vunpack.c.l.b16 %v373
        %v550 = vunpack.c.l.b16 %v374
        %v551 = vunpack.c.l.b16 %v375
        %v552 = vunpack.c.l.b16 %v376
        %v553 = vunpack.c.l.b16 %v377
        %v554 = vunpack.c.l.b16 %v378
        %v555 = vunpack.c.l.b16 %v379
        %v556 = vunpack.c.l.b16 %v380
        %v557 = vunpack.c.l.b16 %v381
        %v558 = vunpack.c.l.b16 %v382
        %v559 = vunpack.c.l.b16 %v383
        %v560 = vunpack.c.l.b16 %v384
        %v561 = vunpack.c.l.b16 %v385
        %v562 = vpack.c.b16 %v483, %v482
        %v563 = vpack.c.b16 %v485, %v484
        %v564 = vpack.c.b16 %v487, %v486
        %v565 = vpack.c.b16 %v489, %v488
        %v566 = vpack.c.b16 %v491, %v490
        %v567 = vpack.c.b16 %v493, %v492
        %v568 = vpack.c.b16 %v495, %v494
        %v569 = vpack.c.b16 %v497, %v496
        %v570 = vpack.c.b16 %v499, %v498
        %v571 = vpack.c.b16 %v501, %v500
        %v572 = vpack.c.b16 %v503, %v502
        %v573 = vpack.c.b16 %v505, %v504
        %v574 = vpack.c.b16 %v507, %v506
        %v575 = vpack.c.b16 %v509, %v508
        %v576 = vpack.c.b16 %v511, %v510
        %v577 = vpack.c.b16 %v513, %v512
        %v578 = vpack.c.b16 %v515, %v514
        %v579 = vpack.c.b16 %v517, %v516
        %v580 = vpack.c.b16 %v519, %v518
        %v581 = vpack.c.b16 %v521, %v520
        %v582 = vpack.c.b16 %v523, %v522
        %v583 = vpack.c.b16 %v525, %v524
        %v584 = vpack.c.b16 %v527, %v526
        %v585 = vpack.c.b16 %v529, %v528
        %v586 = vpack.c.b16 %v531, %v530
        %v587 = vpack.c.b16 %v533, %v532
        %v588 = vpack.c.b16 %v535, %v534
        %v589 = vpack.c.b16 %v537, %v536
        %v590 = vpack.c.b16 %v539, %v538
        %v591 = vpack.c.b16 %v541, %v540
        %v592 = vpack.c.b16 %v543, %v542
        %v593 = vpack.c.b16 %v545, %v544
        %v594 = vpack.c.b16 %v547, %v546
        %v595 = vpack.c.b16 %v549, %v548
        %v596 = vpack.c.b16 %v551, %v550
        %v597 = vpack.c.b16 %v553, %v552
        %v598 = vpack.c.b16 %v555, %v554
        %v599 = vpack.c.b16 %v557, %v556
        %v600 = vpack.c.b16 %v559, %v558
        %v601 = vpack.c.b16 %v561, %v560
        %v658 = vunpack.c.l.b16 %v386
        %v659 = vunpack.c.h.b16 %v386
        %v660 = vunpack.c.l.b16 %v387
        %v661 = vunpack.c.h.b16 %v387
        %v662 = vunpack.c.l.b16 %v388
        %v663 = vunpack.c.h.b16 %v388
        %v664 = vunpack.c.l.b16 %v389
        %v665 = vunpack.c.h.b16 %v389
        %v666 = vunpack.c.l.b16 %v390
        %v667 = vunpack.c.h.b16 %v390
        %v668 = vunpack.c.l.b16 %v391
        %v669 = vunpack.c.h.b16 %v391
        %v670 = vunpack.c.l.b16 %v392
        %v671 = vunpack.c.h.b16 %v392
        %v672 = vunpack.c.l.b16 %v393
        %v673 = vunpack.c.h.b16 %v393
        %v674 = vunpack.c.l.b16 %v394
        %v675 = vunpack.c.h.b16 %v394
        %v676 = vunpack.c.l.b16 %v395
        %v677 = vunpack.c.h.b16 %v395
        %v678 = vunpack.c.l.b16 %v396
        %v679 = vunpack.c.h.b16 %v396
        %v680 = vunpack.c.l.b16 %v397
        %v681 = vunpack.c.h.b16 %v397
        %v682 = vunpack.c.l.b16 %v398
        %v683 = vunpack.c.h.b16 %v398
        %v684 = vunpack.c.l.b16 %v399
        %v685 = vunpack.c.h.b16 %v399
        %v686 = vunpack.c.l.b16 %v400
        %v687 = vunpack.c.h.b16 %v400
        %v688 = vunpack.c.l.b16 %v401
        %v689 = vunpack.c.h.b16 %v401
        %v690 = vpack.c.b16 %v660, %v658
        %v691 = vpack.c.b16 %v661, %v659
        %v692 = vpack.c.b16 %v664, %v662
        %v693 = vpack.c.b16 %v665, %v663
        %v694 = vpack.c.b16 %v668, %v666
        %v695 = vpack.c.b16 %v669, %v667
        %v696 = vpack.c.b16 %v672, %v670
        %v697 = vpack.c.b16 %v673, %v671
        %v698 = vpack.c.b16 %v676, %v674
        %v699 = vpack.c.b16 %v677, %v675
        %v700 = vpack.c.b16 %v680, %v678
        %v701 = vpack.c.b16 %v681, %v679
        %v702 = vpack.c.b16 %v684, %v682
        %v703 = vpack.c.b16 %v685, %v683
        %v704 = vpack.c.b16 %v688, %v686
        %v705 = vpack.c.b16 %v689, %v687
        %722 = vmatpush.bf16.msra.mxu0 %v704
        %723 = vmatpush.bf16.msra.mxu0 %v702
        %724 = vmatpush.bf16.msra.mxu0 %v700
        %725 = vmatpush.bf16.msra.mxu0 %v698
        %726 = vmatpush.bf16.msra.mxu0 %v696
        %727 = vmatpush.bf16.msra.mxu0 %v694
        %728 = vmatpush.bf16.msra.mxu0 %v692
        %729 = vmatpush.bf16.msra.mxu0 %v690
        %730 = vmatmul.bf16.gmra.mxu0 %v562
        %v731 = vpop.f32.mrf.mxu0
        %v732 = vadd.f32 0.0, %v731
        %v733 = vpop.f32.mrf.mxu0
        %v734 = vadd.f32 0.0, %v733
        %735 = vmatmul.bf16.gmra.mxu0 %v563
        %v736 = vpop.f32.mrf.mxu0
        %v737 = vadd.f32 0.0, %v736
        %v738 = vpop.f32.mrf.mxu0
        %v739 = vadd.f32 0.0, %v738
        %740 = vmatmul.bf16.gmra.mxu0 %v564
        %v741 = vpop.f32.mrf.mxu0
        %v742 = vadd.f32 0.0, %v741
        %v743 = vpop.f32.mrf.mxu0
        %v744 = vadd.f32 0.0, %v743
        %745 = vmatmul.bf16.gmra.mxu0 %v565
        %v746 = vpop.f32.mrf.mxu0
        %v747 = vadd.f32 0.0, %v746
        %v748 = vpop.f32.mrf.mxu0
        %v749 = vadd.f32 0.0, %v748
        %750 = vmatmul.bf16.gmra.mxu0 %v566
        %v751 = vpop.f32.mrf.mxu0
        %v752 = vadd.f32 0.0, %v751
        %v753 = vpop.f32.mrf.mxu0
        %v754 = vadd.f32 0.0, %v753
        %755 = vmatmul.bf16.gmra.mxu0 %v567
        %v756 = vpop.f32.mrf.mxu0
        %v757 = vadd.f32 0.0, %v756
        %v758 = vpop.f32.mrf.mxu0
        %v759 = vadd.f32 0.0, %v758
        %760 = vmatmul.bf16.gmra.mxu0 %v568
        %v761 = vpop.f32.mrf.mxu0
        %v762 = vadd.f32 0.0, %v761
        %v763 = vpop.f32.mrf.mxu0
        %v764 = vadd.f32 0.0, %v763
        %765 = vmatmul.bf16.gmra.mxu0 %v569
        %v766 = vpop.f32.mrf.mxu0
        %v767 = vadd.f32 0.0, %v766
        %v768 = vpop.f32.mrf.mxu0
        %v769 = vadd.f32 0.0, %v768
        %770 = vmatmul.bf16.gmra.mxu0 %v570
        %v771 = vpop.f32.mrf.mxu0
        %v772 = vadd.f32 0.0, %v771
        %v773 = vpop.f32.mrf.mxu0
        %v774 = vadd.f32 0.0, %v773
        %775 = vmatmul.bf16.gmra.mxu0 %v571
        %v776 = vpop.f32.mrf.mxu0
        %v777 = vadd.f32 0.0, %v776
        %v778 = vpop.f32.mrf.mxu0
        %v779 = vadd.f32 0.0, %v778
        %780 = vmatmul.bf16.gmra.mxu0 %v572
        %v781 = vpop.f32.mrf.mxu0
        %v782 = vadd.f32 0.0, %v781
        %v783 = vpop.f32.mrf.mxu0
        %v784 = vadd.f32 0.0, %v783
        %785 = vmatmul.bf16.gmra.mxu0 %v573
        %v786 = vpop.f32.mrf.mxu0
        %v787 = vadd.f32 0.0, %v786
        %v788 = vpop.f32.mrf.mxu0
        %v789 = vadd.f32 0.0, %v788
        %790 = vmatmul.bf16.gmra.mxu0 %v574
        %v791 = vpop.f32.mrf.mxu0
        %v792 = vadd.f32 0.0, %v791
        %v793 = vpop.f32.mrf.mxu0
        %v794 = vadd.f32 0.0, %v793
        %795 = vmatmul.bf16.gmra.mxu0 %v575
        %v796 = vpop.f32.mrf.mxu0
        %v797 = vadd.f32 0.0, %v796
        %v798 = vpop.f32.mrf.mxu0
        %v799 = vadd.f32 0.0, %v798
        %800 = vmatmul.bf16.gmra.mxu0 %v576
        %v801 = vpop.f32.mrf.mxu0
        %v802 = vadd.f32 0.0, %v801
        %v803 = vpop.f32.mrf.mxu0
        %v804 = vadd.f32 0.0, %v803
        %805 = vmatmul.bf16.gmra.mxu0 %v577
        %v806 = vpop.f32.mrf.mxu0
        %v807 = vadd.f32 0.0, %v806
        %v808 = vpop.f32.mrf.mxu0
        %v809 = vadd.f32 0.0, %v808
        %810 = vmatmul.bf16.gmra.mxu0 %v578
        %v811 = vpop.f32.mrf.mxu0
        %v812 = vadd.f32 0.0, %v811
        %v813 = vpop.f32.mrf.mxu0
        %v814 = vadd.f32 0.0, %v813
        %815 = vmatmul.bf16.gmra.mxu0 %v579
        %v816 = vpop.f32.mrf.mxu0
        %v817 = vadd.f32 0.0, %v816
        %v818 = vpop.f32.mrf.mxu0
        %v819 = vadd.f32 0.0, %v818
        %820 = vmatmul.bf16.gmra.mxu0 %v580
        %v821 = vpop.f32.mrf.mxu0
        %v822 = vadd.f32 0.0, %v821
        %v823 = vpop.f32.mrf.mxu0
        %v824 = vadd.f32 0.0, %v823
        %825 = vmatmul.bf16.gmra.mxu0 %v581
        %v826 = vpop.f32.mrf.mxu0
        %v827 = vadd.f32 0.0, %v826
        %v828 = vpop.f32.mrf.mxu0
        %v829 = vadd.f32 0.0, %v828
        %830 = vmatmul.bf16.gmra.mxu0 %v582
        %v831 = vpop.f32.mrf.mxu0
        %v832 = vadd.f32 0.0, %v831
        %v833 = vpop.f32.mrf.mxu0
        %v834 = vadd.f32 0.0, %v833
        %835 = vmatmul.bf16.gmra.mxu0 %v583
        %v836 = vpop.f32.mrf.mxu0
        %v837 = vadd.f32 0.0, %v836
        %v838 = vpop.f32.mrf.mxu0
        %v839 = vadd.f32 0.0, %v838
        %840 = vmatmul.bf16.gmra.mxu0 %v584
        %v841 = vpop.f32.mrf.mxu0
        %v842 = vadd.f32 0.0, %v841
        %v843 = vpop.f32.mrf.mxu0
        %v844 = vadd.f32 0.0, %v843
        %845 = vmatmul.bf16.gmra.mxu0 %v585
        %v846 = vpop.f32.mrf.mxu0
        %v847 = vadd.f32 0.0, %v846
        %v848 = vpop.f32.mrf.mxu0
        %v849 = vadd.f32 0.0, %v848
        %850 = vmatmul.bf16.gmra.mxu0 %v586
        %v851 = vpop.f32.mrf.mxu0
        %v852 = vadd.f32 0.0, %v851
        %v853 = vpop.f32.mrf.mxu0
        %v854 = vadd.f32 0.0, %v853
        %855 = vmatmul.bf16.gmra.mxu0 %v587
        %v856 = vpop.f32.mrf.mxu0
        %v857 = vadd.f32 0.0, %v856
        %v858 = vpop.f32.mrf.mxu0
        %v859 = vadd.f32 0.0, %v858
        %860 = vmatmul.bf16.gmra.mxu0 %v588
        %v861 = vpop.f32.mrf.mxu0
        %v862 = vadd.f32 0.0, %v861
        %v863 = vpop.f32.mrf.mxu0
        %v864 = vadd.f32 0.0, %v863
        %865 = vmatmul.bf16.gmra.mxu0 %v589
        %v866 = vpop.f32.mrf.mxu0
        %v867 = vadd.f32 0.0, %v866
        %v868 = vpop.f32.mrf.mxu0
        %v869 = vadd.f32 0.0, %v868
        %870 = vmatmul.bf16.gmra.mxu0 %v590
        %v871 = vpop.f32.mrf.mxu0
        %v872 = vadd.f32 0.0, %v871
        %v873 = vpop.f32.mrf.mxu0
        %v874 = vadd.f32 0.0, %v873
        %875 = vmatmul.bf16.gmra.mxu0 %v591
        %v876 = vpop.f32.mrf.mxu0
        %v877 = vadd.f32 0.0, %v876
        %v878 = vpop.f32.mrf.mxu0
        %v879 = vadd.f32 0.0, %v878
        %880 = vmatmul.bf16.gmra.mxu0 %v592
        %v881 = vpop.f32.mrf.mxu0
        %v882 = vadd.f32 0.0, %v881
        %v883 = vpop.f32.mrf.mxu0
        %v884 = vadd.f32 0.0, %v883
        %885 = vmatmul.bf16.gmra.mxu0 %v593
        %v886 = vpop.f32.mrf.mxu0
        %v887 = vadd.f32 0.0, %v886
        %v888 = vpop.f32.mrf.mxu0
        %v889 = vadd.f32 0.0, %v888
        %890 = vmatmul.bf16.gmra.mxu0 %v594
        %v891 = vpop.f32.mrf.mxu0
        %v892 = vadd.f32 0.0, %v891
        %v893 = vpop.f32.mrf.mxu0
        %v894 = vadd.f32 0.0, %v893
        %895 = vmatmul.bf16.gmra.mxu0 %v595
        %v896 = vpop.f32.mrf.mxu0
        %v897 = vadd.f32 0.0, %v896
        %v898 = vpop.f32.mrf.mxu0
        %v899 = vadd.f32 0.0, %v898
        %900 = vmatmul.bf16.gmra.mxu0 %v596
        %v901 = vpop.f32.mrf.mxu0
        %v902 = vadd.f32 0.0, %v901
        %v903 = vpop.f32.mrf.mxu0
        %v904 = vadd.f32 0.0, %v903
        %905 = vmatmul.bf16.gmra.mxu0 %v597
        %v906 = vpop.f32.mrf.mxu0
        %v907 = vadd.f32 0.0, %v906
        %v908 = vpop.f32.mrf.mxu0
        %v909 = vadd.f32 0.0, %v908
        %910 = vmatmul.bf16.gmra.mxu0 %v598
        %v911 = vpop.f32.mrf.mxu0
        %v912 = vadd.f32 0.0, %v911
        %v913 = vpop.f32.mrf.mxu0
        %v914 = vadd.f32 0.0, %v913
        %915 = vmatmul.bf16.gmra.mxu0 %v599
        %v916 = vpop.f32.mrf.mxu0
        %v917 = vadd.f32 0.0, %v916
        %v918 = vpop.f32.mrf.mxu0
        %v919 = vadd.f32 0.0, %v918
        %920 = vmatmul.bf16.gmra.mxu0 %v600
        %v921 = vpop.f32.mrf.mxu0
        %v922 = vadd.f32 0.0, %v921
        %v923 = vpop.f32.mrf.mxu0
        %v924 = vadd.f32 0.0, %v923
        %925 = vmatmul.bf16.gmra.mxu0 %v601
        %v926 = vpop.f32.mrf.mxu0
        %v927 = vadd.f32 0.0, %v926
        %v928 = vpop.f32.mrf.mxu0
        %v929 = vadd.f32 0.0, %v928
        %930 = vdwg.mxu0
        %931 = vmatpush.bf16.msra.mxu0 %v705
        %932 = vmatpush.bf16.msra.mxu0 %v703
        %933 = vmatpush.bf16.msra.mxu0 %v701
        %934 = vmatpush.bf16.msra.mxu0 %v699
        %935 = vmatpush.bf16.msra.mxu0 %v697
        %936 = vmatpush.bf16.msra.mxu0 %v695
        %937 = vmatpush.bf16.msra.mxu0 %v693
        %938 = vmatpush.bf16.msra.mxu0 %v691
        %939 = vmatmul.bf16.gmra.mxu0 %v562
        %v940 = vpop.f32.mrf.mxu0
        %v941 = vadd.f32 0.0, %v940
        %v942 = vpop.f32.mrf.mxu0
        %v943 = vadd.f32 0.0, %v942
        %944 = vmatmul.bf16.gmra.mxu0 %v563
        %v945 = vpop.f32.mrf.mxu0
        %v946 = vadd.f32 0.0, %v945
        %v947 = vpop.f32.mrf.mxu0
        %v948 = vadd.f32 0.0, %v947
        %949 = vmatmul.bf16.gmra.mxu0 %v564
        %v950 = vpop.f32.mrf.mxu0
        %v951 = vadd.f32 0.0, %v950
        %v952 = vpop.f32.mrf.mxu0
        %v953 = vadd.f32 0.0, %v952
        %954 = vmatmul.bf16.gmra.mxu0 %v565
        %v955 = vpop.f32.mrf.mxu0
        %v956 = vadd.f32 0.0, %v955
        %v957 = vpop.f32.mrf.mxu0
        %v958 = vadd.f32 0.0, %v957
        %959 = vmatmul.bf16.gmra.mxu0 %v566
        %v960 = vpop.f32.mrf.mxu0
        %v961 = vadd.f32 0.0, %v960
        %v962 = vpop.f32.mrf.mxu0
        %v963 = vadd.f32 0.0, %v962
        %964 = vmatmul.bf16.gmra.mxu0 %v567
        %v965 = vpop.f32.mrf.mxu0
        %v966 = vadd.f32 0.0, %v965
        %v967 = vpop.f32.mrf.mxu0
        %v968 = vadd.f32 0.0, %v967
        %969 = vmatmul.bf16.gmra.mxu0 %v568
        %v970 = vpop.f32.mrf.mxu0
        %v971 = vadd.f32 0.0, %v970
        %v972 = vpop.f32.mrf.mxu0
        %v973 = vadd.f32 0.0, %v972
        %974 = vmatmul.bf16.gmra.mxu0 %v569
        %v975 = vpop.f32.mrf.mxu0
        %v976 = vadd.f32 0.0, %v975
        %v977 = vpop.f32.mrf.mxu0
        %v978 = vadd.f32 0.0, %v977
        %979 = vmatmul.bf16.gmra.mxu0 %v570
        %v980 = vpop.f32.mrf.mxu0
        %v981 = vadd.f32 0.0, %v980
        %v982 = vpop.f32.mrf.mxu0
        %v983 = vadd.f32 0.0, %v982
        %984 = vmatmul.bf16.gmra.mxu0 %v571
        %v985 = vpop.f32.mrf.mxu0
        %v986 = vadd.f32 0.0, %v985
        %v987 = vpop.f32.mrf.mxu0
        %v988 = vadd.f32 0.0, %v987
        %989 = vmatmul.bf16.gmra.mxu0 %v572
        %v990 = vpop.f32.mrf.mxu0
        %v991 = vadd.f32 0.0, %v990
        %v992 = vpop.f32.mrf.mxu0
        %v993 = vadd.f32 0.0, %v992
        %994 = vmatmul.bf16.gmra.mxu0 %v573
        %v995 = vpop.f32.mrf.mxu0
        %v996 = vadd.f32 0.0, %v995
        %v997 = vpop.f32.mrf.mxu0
        %v998 = vadd.f32 0.0, %v997
        %999 = vmatmul.bf16.gmra.mxu0 %v574
        %v1000 = vpop.f32.mrf.mxu0
        %v1001 = vadd.f32 0.0, %v1000
        %v1002 = vpop.f32.mrf.mxu0
        %v1003 = vadd.f32 0.0, %v1002
        %1004 = vmatmul.bf16.gmra.mxu0 %v575
        %v1005 = vpop.f32.mrf.mxu0
        %v1006 = vadd.f32 0.0, %v1005
        %v1007 = vpop.f32.mrf.mxu0
        %v1008 = vadd.f32 0.0, %v1007
        %1009 = vmatmul.bf16.gmra.mxu0 %v576
        %v1010 = vpop.f32.mrf.mxu0
        %v1011 = vadd.f32 0.0, %v1010
        %v1012 = vpop.f32.mrf.mxu0
        %v1013 = vadd.f32 0.0, %v1012
        %1014 = vmatmul.bf16.gmra.mxu0 %v577
        %v1015 = vpop.f32.mrf.mxu0
        %v1016 = vadd.f32 0.0, %v1015
        %v1017 = vpop.f32.mrf.mxu0
        %v1018 = vadd.f32 0.0, %v1017
        %1019 = vmatmul.bf16.gmra.mxu0 %v578
        %v1020 = vpop.f32.mrf.mxu0
        %v1021 = vadd.f32 0.0, %v1020
        %v1022 = vpop.f32.mrf.mxu0
        %v1023 = vadd.f32 0.0, %v1022
        %1024 = vmatmul.bf16.gmra.mxu0 %v579
        %v1025 = vpop.f32.mrf.mxu0
        %v1026 = vadd.f32 0.0, %v1025
        %v1027 = vpop.f32.mrf.mxu0
        %v1028 = vadd.f32 0.0, %v1027
        %1029 = vmatmul.bf16.gmra.mxu0 %v580
        %v1030 = vpop.f32.mrf.mxu0
        %v1031 = vadd.f32 0.0, %v1030
        %v1032 = vpop.f32.mrf.mxu0
        %v1033 = vadd.f32 0.0, %v1032
        %1034 = vmatmul.bf16.gmra.mxu0 %v581
        %v1035 = vpop.f32.mrf.mxu0
        %v1036 = vadd.f32 0.0, %v1035
        %v1037 = vpop.f32.mrf.mxu0
        %v1038 = vadd.f32 0.0, %v1037
        %1039 = vmatmul.bf16.gmra.mxu0 %v582
        %v1040 = vpop.f32.mrf.mxu0
        %v1041 = vadd.f32 0.0, %v1040
        %v1042 = vpop.f32.mrf.mxu0
        %v1043 = vadd.f32 0.0, %v1042
        %1044 = vmatmul.bf16.gmra.mxu0 %v583
        %v1045 = vpop.f32.mrf.mxu0
        %v1046 = vadd.f32 0.0, %v1045
        %v1047 = vpop.f32.mrf.mxu0
        %v1048 = vadd.f32 0.0, %v1047
        %1049 = vmatmul.bf16.gmra.mxu0 %v584
        %v1050 = vpop.f32.mrf.mxu0
        %v1051 = vadd.f32 0.0, %v1050
        %v1052 = vpop.f32.mrf.mxu0
        %v1053 = vadd.f32 0.0, %v1052
        %1054 = vmatmul.bf16.gmra.mxu0 %v585
        %v1055 = vpop.f32.mrf.mxu0
        %v1056 = vadd.f32 0.0, %v1055
        %v1057 = vpop.f32.mrf.mxu0
        %v1058 = vadd.f32 0.0, %v1057
        %1059 = vmatmul.bf16.gmra.mxu0 %v586
        %v1060 = vpop.f32.mrf.mxu0
        %v1061 = vadd.f32 0.0, %v1060
        %v1062 = vpop.f32.mrf.mxu0
        %v1063 = vadd.f32 0.0, %v1062
        %1064 = vmatmul.bf16.gmra.mxu0 %v587
        %v1065 = vpop.f32.mrf.mxu0
        %v1066 = vadd.f32 0.0, %v1065
        %v1067 = vpop.f32.mrf.mxu0
        %v1068 = vadd.f32 0.0, %v1067
        %1069 = vmatmul.bf16.gmra.mxu0 %v588
        %v1070 = vpop.f32.mrf.mxu0
        %v1071 = vadd.f32 0.0, %v1070
        %v1072 = vpop.f32.mrf.mxu0
        %v1073 = vadd.f32 0.0, %v1072
        %1074 = vmatmul.bf16.gmra.mxu0 %v589
        %v1075 = vpop.f32.mrf.mxu0
        %v1076 = vadd.f32 0.0, %v1075
        %v1077 = vpop.f32.mrf.mxu0
        %v1078 = vadd.f32 0.0, %v1077
        %1079 = vmatmul.bf16.gmra.mxu0 %v590
        %v1080 = vpop.f32.mrf.mxu0
        %v1081 = vadd.f32 0.0, %v1080
        %v1082 = vpop.f32.mrf.mxu0
        %v1083 = vadd.f32 0.0, %v1082
        %1084 = vmatmul.bf16.gmra.mxu0 %v591
        %v1085 = vpop.f32.mrf.mxu0
        %v1086 = vadd.f32 0.0, %v1085
        %v1087 = vpop.f32.mrf.mxu0
        %v1088 = vadd.f32 0.0, %v1087
        %1089 = vmatmul.bf16.gmra.mxu0 %v592
        %v1090 = vpop.f32.mrf.mxu0
        %v1091 = vadd.f32 0.0, %v1090
        %v1092 = vpop.f32.mrf.mxu0
        %v1093 = vadd.f32 0.0, %v1092
        %1094 = vmatmul.bf16.gmra.mxu0 %v593
        %v1095 = vpop.f32.mrf.mxu0
        %v1096 = vadd.f32 0.0, %v1095
        %v1097 = vpop.f32.mrf.mxu0
        %v1098 = vadd.f32 0.0, %v1097
        %1099 = vmatmul.bf16.gmra.mxu0 %v594
        %v1100 = vpop.f32.mrf.mxu0
        %v1101 = vadd.f32 0.0, %v1100
        %v1102 = vpop.f32.mrf.mxu0
        %v1103 = vadd.f32 0.0, %v1102
        %1104 = vmatmul.bf16.gmra.mxu0 %v595
        %v1105 = vpop.f32.mrf.mxu0
        %v1106 = vadd.f32 0.0, %v1105
        %v1107 = vpop.f32.mrf.mxu0
        %v1108 = vadd.f32 0.0, %v1107
        %1109 = vmatmul.bf16.gmra.mxu0 %v596
        %v1110 = vpop.f32.mrf.mxu0
        %v1111 = vadd.f32 0.0, %v1110
        %v1112 = vpop.f32.mrf.mxu0
        %v1113 = vadd.f32 0.0, %v1112
        %1114 = vmatmul.bf16.gmra.mxu0 %v597
        %v1115 = vpop.f32.mrf.mxu0
        %v1116 = vadd.f32 0.0, %v1115
        %v1117 = vpop.f32.mrf.mxu0
        %v1118 = vadd.f32 0.0, %v1117
        %1119 = vmatmul.bf16.gmra.mxu0 %v598
        %v1120 = vpop.f32.mrf.mxu0
        %v1121 = vadd.f32 0.0, %v1120
        %v1122 = vpop.f32.mrf.mxu0
        %v1123 = vadd.f32 0.0, %v1122
        %1124 = vmatmul.bf16.gmra.mxu0 %v599
        %v1125 = vpop.f32.mrf.mxu0
        %v1126 = vadd.f32 0.0, %v1125
        %v1127 = vpop.f32.mrf.mxu0
        %v1128 = vadd.f32 0.0, %v1127
        %1129 = vmatmul.bf16.gmra.mxu0 %v600
        %v1130 = vpop.f32.mrf.mxu0
        %v1131 = vadd.f32 0.0, %v1130
        %v1132 = vpop.f32.mrf.mxu0
        %v1133 = vadd.f32 0.0, %v1132
        %1134 = vmatmul.bf16.gmra.mxu0 %v601
        %v1135 = vpop.f32.mrf.mxu0
        %v1136 = vadd.f32 0.0, %v1135
        %v1137 = vpop.f32.mrf.mxu0
        %v1138 = vadd.f32 0.0, %v1137
        %1139 = vdwg.mxu0
        %v1140 = vld [vmem:[#allocation7] sm:$0x3]
        %v1142 = vperm.slane %v1140, 0
        %v1143 = vperm.slane %v1140, 1
        %v1146 = vmul.f32 %v732, %v1142
        %v1147 = vmul.f32 %v941, %v1143
        %v1148 = vmul.f32 %v734, %v1142
        %v1149 = vmul.f32 %v943, %v1143
        %v1150 = vmul.f32 %v737, %v1142
        %v1151 = vmul.f32 %v946, %v1143
        %v1152 = vmul.f32 %v739, %v1142
        %v1153 = vmul.f32 %v948, %v1143
        %v1154 = vmul.f32 %v742, %v1142
        %v1155 = vmul.f32 %v951, %v1143
        %v1156 = vmul.f32 %v744, %v1142
        %v1157 = vmul.f32 %v953, %v1143
        %v1158 = vmul.f32 %v747, %v1142
        %v1159 = vmul.f32 %v956, %v1143
        %v1160 = vmul.f32 %v749, %v1142
        %v1161 = vmul.f32 %v958, %v1143
        %v1162 = vmul.f32 %v752, %v1142
        %v1163 = vmul.f32 %v961, %v1143
        %v1164 = vmul.f32 %v754, %v1142
        %v1165 = vmul.f32 %v963, %v1143
        %v1166 = vmul.f32 %v757, %v1142
        %v1167 = vmul.f32 %v966, %v1143
        %v1168 = vmul.f32 %v759, %v1142
        %v1169 = vmul.f32 %v968, %v1143
        %v1170 = vmul.f32 %v762, %v1142
        %v1171 = vmul.f32 %v971, %v1143
        %v1172 = vmul.f32 %v764, %v1142
        %v1173 = vmul.f32 %v973, %v1143
        %v1174 = vmul.f32 %v767, %v1142
        %v1175 = vmul.f32 %v976, %v1143
        %v1176 = vmul.f32 %v769, %v1142
        %v1177 = vmul.f32 %v978, %v1143
        %v1178 = vmul.f32 %v772, %v1142
        %v1179 = vmul.f32 %v981, %v1143
        %v1180 = vmul.f32 %v774, %v1142
        %v1181 = vmul.f32 %v983, %v1143
        %v1182 = vmul.f32 %v777, %v1142
        %v1183 = vmul.f32 %v986, %v1143
        %v1184 = vmul.f32 %v779, %v1142
        %v1185 = vmul.f32 %v988, %v1143
        %v1186 = vmul.f32 %v782, %v1142
        %v1187 = vmul.f32 %v991, %v1143
        %v1188 = vmul.f32 %v784, %v1142
        %v1189 = vmul.f32 %v993, %v1143
        %v1190 = vmul.f32 %v787, %v1142
        %v1191 = vmul.f32 %v996, %v1143
        %v1192 = vmul.f32 %v789, %v1142
        %v1193 = vmul.f32 %v998, %v1143
        %v1194 = vmul.f32 %v792, %v1142
        %v1195 = vmul.f32 %v1001, %v1143
        %v1196 = vmul.f32 %v794, %v1142
        %v1197 = vmul.f32 %v1003, %v1143
        %v1198 = vmul.f32 %v797, %v1142
        %v1199 = vmul.f32 %v1006, %v1143
        %v1200 = vmul.f32 %v799, %v1142
        %v1201 = vmul.f32 %v1008, %v1143
        %v1202 = vmul.f32 %v802, %v1142
        %v1203 = vmul.f32 %v1011, %v1143
        %v1204 = vmul.f32 %v804, %v1142
        %v1205 = vmul.f32 %v1013, %v1143
        %v1206 = vmul.f32 %v807, %v1142
        %v1207 = vmul.f32 %v1016, %v1143
        %v1208 = vmul.f32 %v809, %v1142
        %v1209 = vmul.f32 %v1018, %v1143
        %v1210 = vmul.f32 %v812, %v1142
        %v1211 = vmul.f32 %v1021, %v1143
        %v1212 = vmul.f32 %v814, %v1142
        %v1213 = vmul.f32 %v1023, %v1143
        %v1214 = vmul.f32 %v817, %v1142
        %v1215 = vmul.f32 %v1026, %v1143
        %v1216 = vmul.f32 %v819, %v1142
        %v1217 = vmul.f32 %v1028, %v1143
        %v1218 = vmul.f32 %v822, %v1142
        %v1219 = vmul.f32 %v1031, %v1143
        %v1220 = vmul.f32 %v824, %v1142
        %v1221 = vmul.f32 %v1033, %v1143
        %v1222 = vmul.f32 %v827, %v1142
        %v1223 = vmul.f32 %v1036, %v1143
        %v1224 = vmul.f32 %v829, %v1142
        %v1225 = vmul.f32 %v1038, %v1143
        %v1226 = vmul.f32 %v832, %v1142
        %v1227 = vmul.f32 %v1041, %v1143
        %v1228 = vmul.f32 %v834, %v1142
        %v1229 = vmul.f32 %v1043, %v1143
        %v1230 = vmul.f32 %v837, %v1142
        %v1231 = vmul.f32 %v1046, %v1143
        %v1232 = vmul.f32 %v839, %v1142
        %v1233 = vmul.f32 %v1048, %v1143
        %v1234 = vmul.f32 %v842, %v1142
        %v1235 = vmul.f32 %v1051, %v1143
        %v1236 = vmul.f32 %v844, %v1142
        %v1237 = vmul.f32 %v1053, %v1143
        %v1238 = vmul.f32 %v847, %v1142
        %v1239 = vmul.f32 %v1056, %v1143
        %v1240 = vmul.f32 %v849, %v1142
        %v1241 = vmul.f32 %v1058, %v1143
        %v1242 = vmul.f32 %v852, %v1142
        %v1243 = vmul.f32 %v1061, %v1143
        %v1244 = vmul.f32 %v854, %v1142
        %v1245 = vmul.f32 %v1063, %v1143
        %v1246 = vmul.f32 %v857, %v1142
        %v1247 = vmul.f32 %v1066, %v1143
        %v1248 = vmul.f32 %v859, %v1142
        %v1249 = vmul.f32 %v1068, %v1143
        %v1250 = vmul.f32 %v862, %v1142
        %v1251 = vmul.f32 %v1071, %v1143
        %v1252 = vmul.f32 %v864, %v1142
        %v1253 = vmul.f32 %v1073, %v1143
        %v1254 = vmul.f32 %v867, %v1142
        %v1255 = vmul.f32 %v1076, %v1143
        %v1256 = vmul.f32 %v869, %v1142
        %v1257 = vmul.f32 %v1078, %v1143
        %v1258 = vmul.f32 %v872, %v1142
        %v1259 = vmul.f32 %v1081, %v1143
        %v1260 = vmul.f32 %v874, %v1142
        %v1261 = vmul.f32 %v1083, %v1143
        %v1262 = vmul.f32 %v877, %v1142
        %v1263 = vmul.f32 %v1086, %v1143
        %v1264 = vmul.f32 %v879, %v1142
        %v1265 = vmul.f32 %v1088, %v1143
        %v1266 = vmul.f32 %v882, %v1142
        %v1267 = vmul.f32 %v1091, %v1143
        %v1268 = vmul.f32 %v884, %v1142
        %v1269 = vmul.f32 %v1093, %v1143
        %v1270 = vmul.f32 %v887, %v1142
        %v1271 = vmul.f32 %v1096, %v1143
        %v1272 = vmul.f32 %v889, %v1142
        %v1273 = vmul.f32 %v1098, %v1143
        %v1274 = vmul.f32 %v892, %v1142
        %v1275 = vmul.f32 %v1101, %v1143
        %v1276 = vmul.f32 %v894, %v1142
        %v1277 = vmul.f32 %v1103, %v1143
        %v1278 = vmul.f32 %v897, %v1142
        %v1279 = vmul.f32 %v1106, %v1143
        %v1280 = vmul.f32 %v899, %v1142
        %v1281 = vmul.f32 %v1108, %v1143
        %v1282 = vmul.f32 %v902, %v1142
        %v1283 = vmul.f32 %v1111, %v1143
        %v1284 = vmul.f32 %v904, %v1142
        %v1285 = vmul.f32 %v1113, %v1143
        %v1286 = vmul.f32 %v907, %v1142
        %v1287 = vmul.f32 %v1116, %v1143
        %v1288 = vmul.f32 %v909, %v1142
        %v1289 = vmul.f32 %v1118, %v1143
        %v1290 = vmul.f32 %v912, %v1142
        %v1291 = vmul.f32 %v1121, %v1143
        %v1292 = vmul.f32 %v914, %v1142
        %v1293 = vmul.f32 %v1123, %v1143
        %v1294 = vmul.f32 %v917, %v1142
        %v1295 = vmul.f32 %v1126, %v1143
        %v1296 = vmul.f32 %v919, %v1142
        %v1297 = vmul.f32 %v1128, %v1143
        %v1298 = vmul.f32 %v922, %v1142
        %v1299 = vmul.f32 %v1131, %v1143
        %v1300 = vmul.f32 %v924, %v1142
        %v1301 = vmul.f32 %v1133, %v1143
        %v1302 = vmul.f32 %v927, %v1142
        %v1303 = vmul.f32 %v1136, %v1143
        %v1304 = vmul.f32 %v929, %v1142
        %v1305 = vmul.f32 %v1138, %v1143
        %v1306 = vld [vmem:[#allocation8] sm:$0x3]
        %v1308 = vperm.slane %v1306, 0
        %v1309 = vperm.slane %v1306, 1
        %v1312 = vadd.f32 %v1146, %v1308
        %v1313 = vadd.f32 %v1147, %v1309
        %v1314 = vadd.f32 %v1148, %v1308
        %v1315 = vadd.f32 %v1149, %v1309
        %v1316 = vadd.f32 %v1150, %v1308
        %v1317 = vadd.f32 %v1151, %v1309
        %v1318 = vadd.f32 %v1152, %v1308
        %v1319 = vadd.f32 %v1153, %v1309
        %v1320 = vadd.f32 %v1154, %v1308
        %v1321 = vadd.f32 %v1155, %v1309
        %v1322 = vadd.f32 %v1156, %v1308
        %v1323 = vadd.f32 %v1157, %v1309
        %v1324 = vadd.f32 %v1158, %v1308
        %v1325 = vadd.f32 %v1159, %v1309
        %v1326 = vadd.f32 %v1160, %v1308
        %v1327 = vadd.f32 %v1161, %v1309
        %v1328 = vadd.f32 %v1162, %v1308
        %v1329 = vadd.f32 %v1163, %v1309
        %v1330 = vadd.f32 %v1164, %v1308
        %v1331 = vadd.f32 %v1165, %v1309
        %v1332 = vadd.f32 %v1166, %v1308
        %v1333 = vadd.f32 %v1167, %v1309
        %v1334 = vadd.f32 %v1168, %v1308
        %v1335 = vadd.f32 %v1169, %v1309
        %v1336 = vadd.f32 %v1170, %v1308
        %v1337 = vadd.f32 %v1171, %v1309
        %v1338 = vadd.f32 %v1172, %v1308
        %v1339 = vadd.f32 %v1173, %v1309
        %v1340 = vadd.f32 %v1174, %v1308
        %v1341 = vadd.f32 %v1175, %v1309
        %v1342 = vadd.f32 %v1176, %v1308
        %v1343 = vadd.f32 %v1177, %v1309
        %v1344 = vadd.f32 %v1178, %v1308
        %v1345 = vadd.f32 %v1179, %v1309
        %v1346 = vadd.f32 %v1180, %v1308
        %v1347 = vadd.f32 %v1181, %v1309
        %v1348 = vadd.f32 %v1182, %v1308
        %v1349 = vadd.f32 %v1183, %v1309
        %v1350 = vadd.f32 %v1184, %v1308
        %v1351 = vadd.f32 %v1185, %v1309
        %v1352 = vadd.f32 %v1186, %v1308
        %v1353 = vadd.f32 %v1187, %v1309
        %v1354 = vadd.f32 %v1188, %v1308
        %v1355 = vadd.f32 %v1189, %v1309
        %v1356 = vadd.f32 %v1190, %v1308
        %v1357 = vadd.f32 %v1191, %v1309
        %v1358 = vadd.f32 %v1192, %v1308
        %v1359 = vadd.f32 %v1193, %v1309
        %v1360 = vadd.f32 %v1194, %v1308
        %v1361 = vadd.f32 %v1195, %v1309
        %v1362 = vadd.f32 %v1196, %v1308
        %v1363 = vadd.f32 %v1197, %v1309
        %v1364 = vadd.f32 %v1198, %v1308
        %v1365 = vadd.f32 %v1199, %v1309
        %v1366 = vadd.f32 %v1200, %v1308
        %v1367 = vadd.f32 %v1201, %v1309
        %v1368 = vadd.f32 %v1202, %v1308
        %v1369 = vadd.f32 %v1203, %v1309
        %v1370 = vadd.f32 %v1204, %v1308
        %v1371 = vadd.f32 %v1205, %v1309
        %v1372 = vadd.f32 %v1206, %v1308
        %v1373 = vadd.f32 %v1207, %v1309
        %v1374 = vadd.f32 %v1208, %v1308
        %v1375 = vadd.f32 %v1209, %v1309
        %v1376 = vadd.f32 %v1210, %v1308
        %v1377 = vadd.f32 %v1211, %v1309
        %v1378 = vadd.f32 %v1212, %v1308
        %v1379 = vadd.f32 %v1213, %v1309
        %v1380 = vadd.f32 %v1214, %v1308
        %v1381 = vadd.f32 %v1215, %v1309
        %v1382 = vadd.f32 %v1216, %v1308
        %v1383 = vadd.f32 %v1217, %v1309
        %v1384 = vadd.f32 %v1218, %v1308
        %v1385 = vadd.f32 %v1219, %v1309
        %v1386 = vadd.f32 %v1220, %v1308
        %v1387 = vadd.f32 %v1221, %v1309
        %v1388 = vadd.f32 %v1222, %v1308
        %v1389 = vadd.f32 %v1223, %v1309
        %v1390 = vadd.f32 %v1224, %v1308
        %v1391 = vadd.f32 %v1225, %v1309
        %v1392 = vadd.f32 %v1226, %v1308
        %v1393 = vadd.f32 %v1227, %v1309
        %v1394 = vadd.f32 %v1228, %v1308
        %v1395 = vadd.f32 %v1229, %v1309
        %v1396 = vadd.f32 %v1230, %v1308
        %v1397 = vadd.f32 %v1231, %v1309
        %v1398 = vadd.f32 %v1232, %v1308
        %v1399 = vadd.f32 %v1233, %v1309
        %v1400 = vadd.f32 %v1234, %v1308
        %v1401 = vadd.f32 %v1235, %v1309
        %v1402 = vadd.f32 %v1236, %v1308
        %v1403 = vadd.f32 %v1237, %v1309
        %v1404 = vadd.f32 %v1238, %v1308
        %v1405 = vadd.f32 %v1239, %v1309
        %v1406 = vadd.f32 %v1240, %v1308
        %v1407 = vadd.f32 %v1241, %v1309
        %v1408 = vadd.f32 %v1242, %v1308
        %v1409 = vadd.f32 %v1243, %v1309
        %v1410 = vadd.f32 %v1244, %v1308
        %v1411 = vadd.f32 %v1245, %v1309
        %v1412 = vadd.f32 %v1246, %v1308
        %v1413 = vadd.f32 %v1247, %v1309
        %v1414 = vadd.f32 %v1248, %v1308
        %v1415 = vadd.f32 %v1249, %v1309
        %v1416 = vadd.f32 %v1250, %v1308
        %v1417 = vadd.f32 %v1251, %v1309
        %v1418 = vadd.f32 %v1252, %v1308
        %v1419 = vadd.f32 %v1253, %v1309
        %v1420 = vadd.f32 %v1254, %v1308
        %v1421 = vadd.f32 %v1255, %v1309
        %v1422 = vadd.f32 %v1256, %v1308
        %v1423 = vadd.f32 %v1257, %v1309
        %v1424 = vadd.f32 %v1258, %v1308
        %v1425 = vadd.f32 %v1259, %v1309
        %v1426 = vadd.f32 %v1260, %v1308
        %v1427 = vadd.f32 %v1261, %v1309
        %v1428 = vadd.f32 %v1262, %v1308
        %v1429 = vadd.f32 %v1263, %v1309
        %v1430 = vadd.f32 %v1264, %v1308
        %v1431 = vadd.f32 %v1265, %v1309
        %v1432 = vadd.f32 %v1266, %v1308
        %v1433 = vadd.f32 %v1267, %v1309
        %v1434 = vadd.f32 %v1268, %v1308
        %v1435 = vadd.f32 %v1269, %v1309
        %v1436 = vadd.f32 %v1270, %v1308
        %v1437 = vadd.f32 %v1271, %v1309
        %v1438 = vadd.f32 %v1272, %v1308
        %v1439 = vadd.f32 %v1273, %v1309
        %v1440 = vadd.f32 %v1274, %v1308
        %v1441 = vadd.f32 %v1275, %v1309
        %v1442 = vadd.f32 %v1276, %v1308
        %v1443 = vadd.f32 %v1277, %v1309
        %v1444 = vadd.f32 %v1278, %v1308
        %v1445 = vadd.f32 %v1279, %v1309
        %v1446 = vadd.f32 %v1280, %v1308
        %v1447 = vadd.f32 %v1281, %v1309
        %v1448 = vadd.f32 %v1282, %v1308
        %v1449 = vadd.f32 %v1283, %v1309
        %v1450 = vadd.f32 %v1284, %v1308
        %v1451 = vadd.f32 %v1285, %v1309
        %v1452 = vadd.f32 %v1286, %v1308
        %v1453 = vadd.f32 %v1287, %v1309
        %v1454 = vadd.f32 %v1288, %v1308
        %v1455 = vadd.f32 %v1289, %v1309
        %v1456 = vadd.f32 %v1290, %v1308
        %v1457 = vadd.f32 %v1291, %v1309
        %v1458 = vadd.f32 %v1292, %v1308
        %v1459 = vadd.f32 %v1293, %v1309
        %v1460 = vadd.f32 %v1294, %v1308
        %v1461 = vadd.f32 %v1295, %v1309
        %v1462 = vadd.f32 %v1296, %v1308
        %v1463 = vadd.f32 %v1297, %v1309
        %v1464 = vadd.f32 %v1298, %v1308
        %v1465 = vadd.f32 %v1299, %v1309
        %v1466 = vadd.f32 %v1300, %v1308
        %v1467 = vadd.f32 %v1301, %v1309
        %v1468 = vadd.f32 %v1302, %v1308
        %v1469 = vadd.f32 %v1303, %v1309
        %v1470 = vadd.f32 %v1304, %v1308
        %v1471 = vadd.f32 %v1305, %v1309
        %v1472 = vmax.f32 %v1312, 0.0
        %v1473 = vmax.f32 %v1313, 0.0
        %v1474 = vmax.f32 %v1314, 0.0
        %v1475 = vmax.f32 %v1315, 0.0
        %v1476 = vmax.f32 %v1316, 0.0
        %v1477 = vmax.f32 %v1317, 0.0
        %v1478 = vmax.f32 %v1318, 0.0
        %v1479 = vmax.f32 %v1319, 0.0
        %v1480 = vmax.f32 %v1320, 0.0
        %v1481 = vmax.f32 %v1321, 0.0
        %v1482 = vmax.f32 %v1322, 0.0
        %v1483 = vmax.f32 %v1323, 0.0
        %v1484 = vmax.f32 %v1324, 0.0
        %v1485 = vmax.f32 %v1325, 0.0
        %v1486 = vmax.f32 %v1326, 0.0
        %v1487 = vmax.f32 %v1327, 0.0
        %v1488 = vmax.f32 %v1328, 0.0
        %v1489 = vmax.f32 %v1329, 0.0
        %v1490 = vmax.f32 %v1330, 0.0
        %v1491 = vmax.f32 %v1331, 0.0
        %v1492 = vmax.f32 %v1332, 0.0
        %v1493 = vmax.f32 %v1333, 0.0
        %v1494 = vmax.f32 %v1334, 0.0
        %v1495 = vmax.f32 %v1335, 0.0
        %v1496 = vmax.f32 %v1336, 0.0
        %v1497 = vmax.f32 %v1337, 0.0
        %v1498 = vmax.f32 %v1338, 0.0
        %v1499 = vmax.f32 %v1339, 0.0
        %v1500 = vmax.f32 %v1340, 0.0
        %v1501 = vmax.f32 %v1341, 0.0
        %v1502 = vmax.f32 %v1342, 0.0
        %v1503 = vmax.f32 %v1343, 0.0
        %v1504 = vmax.f32 %v1344, 0.0
        %v1505 = vmax.f32 %v1345, 0.0
        %v1506 = vmax.f32 %v1346, 0.0
        %v1507 = vmax.f32 %v1347, 0.0
        %v1508 = vmax.f32 %v1348, 0.0
        %v1509 = vmax.f32 %v1349, 0.0
        %v1510 = vmax.f32 %v1350, 0.0
        %v1511 = vmax.f32 %v1351, 0.0
        %v1512 = vmax.f32 %v1352, 0.0
        %v1513 = vmax.f32 %v1353, 0.0
        %v1514 = vmax.f32 %v1354, 0.0
        %v1515 = vmax.f32 %v1355, 0.0
        %v1516 = vmax.f32 %v1356, 0.0
        %v1517 = vmax.f32 %v1357, 0.0
        %v1518 = vmax.f32 %v1358, 0.0
        %v1519 = vmax.f32 %v1359, 0.0
        %v1520 = vmax.f32 %v1360, 0.0
        %v1521 = vmax.f32 %v1361, 0.0
        %v1522 = vmax.f32 %v1362, 0.0
        %v1523 = vmax.f32 %v1363, 0.0
        %v1524 = vmax.f32 %v1364, 0.0
        %v1525 = vmax.f32 %v1365, 0.0
        %v1526 = vmax.f32 %v1366, 0.0
        %v1527 = vmax.f32 %v1367, 0.0
        %v1528 = vmax.f32 %v1368, 0.0
        %v1529 = vmax.f32 %v1369, 0.0
        %v1530 = vmax.f32 %v1370, 0.0
        %v1531 = vmax.f32 %v1371, 0.0
        %v1532 = vmax.f32 %v1372, 0.0
        %v1533 = vmax.f32 %v1373, 0.0
        %v1534 = vmax.f32 %v1374, 0.0
        %v1535 = vmax.f32 %v1375, 0.0
        %v1536 = vmax.f32 %v1376, 0.0
        %v1537 = vmax.f32 %v1377, 0.0
        %v1538 = vmax.f32 %v1378, 0.0
        %v1539 = vmax.f32 %v1379, 0.0
        %v1540 = vmax.f32 %v1380, 0.0
        %v1541 = vmax.f32 %v1381, 0.0
        %v1542 = vmax.f32 %v1382, 0.0
        %v1543 = vmax.f32 %v1383, 0.0
        %v1544 = vmax.f32 %v1384, 0.0
        %v1545 = vmax.f32 %v1385, 0.0
        %v1546 = vmax.f32 %v1386, 0.0
        %v1547 = vmax.f32 %v1387, 0.0
        %v1548 = vmax.f32 %v1388, 0.0
        %v1549 = vmax.f32 %v1389, 0.0
        %v1550 = vmax.f32 %v1390, 0.0
        %v1551 = vmax.f32 %v1391, 0.0
        %v1552 = vmax.f32 %v1392, 0.0
        %v1553 = vmax.f32 %v1393, 0.0
        %v1554 = vmax.f32 %v1394, 0.0
        %v1555 = vmax.f32 %v1395, 0.0
        %v1556 = vmax.f32 %v1396, 0.0
        %v1557 = vmax.f32 %v1397, 0.0
        %v1558 = vmax.f32 %v1398, 0.0
        %v1559 = vmax.f32 %v1399, 0.0
        %v1560 = vmax.f32 %v1400, 0.0
        %v1561 = vmax.f32 %v1401, 0.0
        %v1562 = vmax.f32 %v1402, 0.0
        %v1563 = vmax.f32 %v1403, 0.0
        %v1564 = vmax.f32 %v1404, 0.0
        %v1565 = vmax.f32 %v1405, 0.0
        %v1566 = vmax.f32 %v1406, 0.0
        %v1567 = vmax.f32 %v1407, 0.0
        %v1568 = vmax.f32 %v1408, 0.0
        %v1569 = vmax.f32 %v1409, 0.0
        %v1570 = vmax.f32 %v1410, 0.0
        %v1571 = vmax.f32 %v1411, 0.0
        %v1572 = vmax.f32 %v1412, 0.0
        %v1573 = vmax.f32 %v1413, 0.0
        %v1574 = vmax.f32 %v1414, 0.0
        %v1575 = vmax.f32 %v1415, 0.0
        %v1576 = vmax.f32 %v1416, 0.0
        %v1577 = vmax.f32 %v1417, 0.0
        %v1578 = vmax.f32 %v1418, 0.0
        %v1579 = vmax.f32 %v1419, 0.0
        %v1580 = vmax.f32 %v1420, 0.0
        %v1581 = vmax.f32 %v1421, 0.0
        %v1582 = vmax.f32 %v1422, 0.0
        %v1583 = vmax.f32 %v1423, 0.0
        %v1584 = vmax.f32 %v1424, 0.0
        %v1585 = vmax.f32 %v1425, 0.0
        %v1586 = vmax.f32 %v1426, 0.0
        %v1587 = vmax.f32 %v1427, 0.0
        %v1588 = vmax.f32 %v1428, 0.0
        %v1589 = vmax.f32 %v1429, 0.0
        %v1590 = vmax.f32 %v1430, 0.0
        %v1591 = vmax.f32 %v1431, 0.0
        %v1592 = vmax.f32 %v1432, 0.0
        %v1593 = vmax.f32 %v1433, 0.0
        %v1594 = vmax.f32 %v1434, 0.0
        %v1595 = vmax.f32 %v1435, 0.0
        %v1596 = vmax.f32 %v1436, 0.0
        %v1597 = vmax.f32 %v1437, 0.0
        %v1598 = vmax.f32 %v1438, 0.0
        %v1599 = vmax.f32 %v1439, 0.0
        %v1600 = vmax.f32 %v1440, 0.0
        %v1601 = vmax.f32 %v1441, 0.0
        %v1602 = vmax.f32 %v1442, 0.0
        %v1603 = vmax.f32 %v1443, 0.0
        %v1604 = vmax.f32 %v1444, 0.0
        %v1605 = vmax.f32 %v1445, 0.0
        %v1606 = vmax.f32 %v1446, 0.0
        %v1607 = vmax.f32 %v1447, 0.0
        %v1608 = vmax.f32 %v1448, 0.0
        %v1609 = vmax.f32 %v1449, 0.0
        %v1610 = vmax.f32 %v1450, 0.0
        %v1611 = vmax.f32 %v1451, 0.0
        %v1612 = vmax.f32 %v1452, 0.0
        %v1613 = vmax.f32 %v1453, 0.0
        %v1614 = vmax.f32 %v1454, 0.0
        %v1615 = vmax.f32 %v1455, 0.0
        %v1616 = vmax.f32 %v1456, 0.0
        %v1617 = vmax.f32 %v1457, 0.0
        %v1618 = vmax.f32 %v1458, 0.0
        %v1619 = vmax.f32 %v1459, 0.0
        %v1620 = vmax.f32 %v1460, 0.0
        %v1621 = vmax.f32 %v1461, 0.0
        %v1622 = vmax.f32 %v1462, 0.0
        %v1623 = vmax.f32 %v1463, 0.0
        %v1624 = vmax.f32 %v1464, 0.0
        %v1625 = vmax.f32 %v1465, 0.0
        %v1626 = vmax.f32 %v1466, 0.0
        %v1627 = vmax.f32 %v1467, 0.0
        %v1628 = vmax.f32 %v1468, 0.0
        %v1629 = vmax.f32 %v1469, 0.0
        %v1630 = vmax.f32 %v1470, 0.0
        %v1631 = vmax.f32 %v1471, 0.0
        %v1632 = vpack.c.bf16 %v1473, %v1472
        %v1633 = vpack.c.bf16 %v1475, %v1474
        %v1634 = vpack.c.bf16 %v1477, %v1476
        %v1635 = vpack.c.bf16 %v1479, %v1478
        %v1636 = vpack.c.bf16 %v1481, %v1480
        %v1637 = vpack.c.bf16 %v1483, %v1482
        %v1638 = vpack.c.bf16 %v1485, %v1484
        %v1639 = vpack.c.bf16 %v1487, %v1486
        %v1640 = vpack.c.bf16 %v1489, %v1488
        %v1641 = vpack.c.bf16 %v1491, %v1490
        %v1642 = vpack.c.bf16 %v1493, %v1492
        %v1643 = vpack.c.bf16 %v1495, %v1494
        %v1644 = vpack.c.bf16 %v1497, %v1496
        %v1645 = vpack.c.bf16 %v1499, %v1498
        %v1646 = vpack.c.bf16 %v1501, %v1500
        %v1647 = vpack.c.bf16 %v1503, %v1502
        %v1648 = vpack.c.bf16 %v1505, %v1504
        %v1649 = vpack.c.bf16 %v1507, %v1506
        %v1650 = vpack.c.bf16 %v1509, %v1508
        %v1651 = vpack.c.bf16 %v1511, %v1510
        %v1652 = vpack.c.bf16 %v1513, %v1512
        %v1653 = vpack.c.bf16 %v1515, %v1514
        %v1654 = vpack.c.bf16 %v1517, %v1516
        %v1655 = vpack.c.bf16 %v1519, %v1518
        %v1656 = vpack.c.bf16 %v1521, %v1520
        %v1657 = vpack.c.bf16 %v1523, %v1522
        %v1658 = vpack.c.bf16 %v1525, %v1524
        %v1659 = vpack.c.bf16 %v1527, %v1526
        %v1660 = vpack.c.bf16 %v1529, %v1528
        %v1661 = vpack.c.bf16 %v1531, %v1530
        %v1662 = vpack.c.bf16 %v1533, %v1532
        %v1663 = vpack.c.bf16 %v1535, %v1534
        %v1664 = vpack.c.bf16 %v1537, %v1536
        %v1665 = vpack.c.bf16 %v1539, %v1538
        %v1666 = vpack.c.bf16 %v1541, %v1540
        %v1667 = vpack.c.bf16 %v1543, %v1542
        %v1668 = vpack.c.bf16 %v1545, %v1544
        %v1669 = vpack.c.bf16 %v1547, %v1546
        %v1670 = vpack.c.bf16 %v1549, %v1548
        %v1671 = vpack.c.bf16 %v1551, %v1550
        %v1672 = vpack.c.bf16 %v1553, %v1552
        %v1673 = vpack.c.bf16 %v1555, %v1554
        %v1674 = vpack.c.bf16 %v1557, %v1556
        %v1675 = vpack.c.bf16 %v1559, %v1558
        %v1676 = vpack.c.bf16 %v1561, %v1560
        %v1677 = vpack.c.bf16 %v1563, %v1562
        %v1678 = vpack.c.bf16 %v1565, %v1564
        %v1679 = vpack.c.bf16 %v1567, %v1566
        %v1680 = vpack.c.bf16 %v1569, %v1568
        %v1681 = vpack.c.bf16 %v1571, %v1570
        %v1682 = vpack.c.bf16 %v1573, %v1572
        %v1683 = vpack.c.bf16 %v1575, %v1574
        %v1684 = vpack.c.bf16 %v1577, %v1576
        %v1685 = vpack.c.bf16 %v1579, %v1578
        %v1686 = vpack.c.bf16 %v1581, %v1580
        %v1687 = vpack.c.bf16 %v1583, %v1582
        %v1688 = vpack.c.bf16 %v1585, %v1584
        %v1689 = vpack.c.bf16 %v1587, %v1586
        %v1690 = vpack.c.bf16 %v1589, %v1588
        %v1691 = vpack.c.bf16 %v1591, %v1590
        %v1692 = vpack.c.bf16 %v1593, %v1592
        %v1693 = vpack.c.bf16 %v1595, %v1594
        %v1694 = vpack.c.bf16 %v1597, %v1596
        %v1695 = vpack.c.bf16 %v1599, %v1598
        %v1696 = vpack.c.bf16 %v1601, %v1600
        %v1697 = vpack.c.bf16 %v1603, %v1602
        %v1698 = vpack.c.bf16 %v1605, %v1604
        %v1699 = vpack.c.bf16 %v1607, %v1606
        %v1700 = vpack.c.bf16 %v1609, %v1608
        %v1701 = vpack.c.bf16 %v1611, %v1610
        %v1702 = vpack.c.bf16 %v1613, %v1612
        %v1703 = vpack.c.bf16 %v1615, %v1614
        %v1704 = vpack.c.bf16 %v1617, %v1616
        %v1705 = vpack.c.bf16 %v1619, %v1618
        %v1706 = vpack.c.bf16 %v1621, %v1620
        %v1707 = vpack.c.bf16 %v1623, %v1622
        %v1708 = vpack.c.bf16 %v1625, %v1624
        %v1709 = vpack.c.bf16 %v1627, %v1626
        %v1710 = vpack.c.bf16 %v1629, %v1628
        %v1711 = vpack.c.bf16 %v1631, %v1630
        %1712 = vst [vmem:[%s299] sm:$0xff] %v1632
        %1713 = vst [vmem:[%s299 + $0x8] sm:$0xff] %v1633
        %1714 = vst [vmem:[%s299 + $0x10] sm:$0xff] %v1634
        %1715 = vst [vmem:[%s299 + $0x18] sm:$0xff] %v1635
        %1716 = vst [vmem:[%s299 + $0x20] sm:$0xff] %v1636
        %1717 = vst [vmem:[%s299 + $0x28] sm:$0xff] %v1637
        %1718 = vst [vmem:[%s299 + $0x30] sm:$0xff] %v1638
        %1719 = vst [vmem:[%s299 + $0x38] sm:$0xff] %v1639
        %1720 = vst [vmem:[%s299 + $0x40] sm:$0xff] %v1640
        %1721 = vst [vmem:[%s299 + $0x48] sm:$0xff] %v1641
        %1722 = vst [vmem:[%s299 + $0x50] sm:$0xff] %v1642
        %1723 = vst [vmem:[%s299 + $0x58] sm:$0xff] %v1643
        %1724 = vst [vmem:[%s299 + $0x60] sm:$0xff] %v1644
        %1725 = vst [vmem:[%s299 + $0x68] sm:$0xff] %v1645
        %1726 = vst [vmem:[%s299 + $0x70] sm:$0xff] %v1646
        %1727 = vst [vmem:[%s299 + $0x78] sm:$0xff] %v1647
        %1728 = vst [vmem:[%s299 + $0x80] sm:$0xff] %v1648
        %1729 = vst [vmem:[%s299 + $0x88] sm:$0xff] %v1649
        %1730 = vst [vmem:[%s299 + $0x90] sm:$0xff] %v1650
        %1731 = vst [vmem:[%s299 + $0x98] sm:$0xff] %v1651
        %1732 = vst [vmem:[%s299 + $0xa0] sm:$0xff] %v1652
        %1733 = vst [vmem:[%s299 + $0xa8] sm:$0xff] %v1653
        %1734 = vst [vmem:[%s299 + $0xb0] sm:$0xff] %v1654
        %1735 = vst [vmem:[%s299 + $0xb8] sm:$0xff] %v1655
        %1736 = vst [vmem:[%s299 + $0xc0] sm:$0xff] %v1656
        %1737 = vst [vmem:[%s299 + $0xc8] sm:$0xff] %v1657
        %1738 = vst [vmem:[%s299 + $0xd0] sm:$0xff] %v1658
        %1739 = vst [vmem:[%s299 + $0xd8] sm:$0xff] %v1659
        %1740 = vst [vmem:[%s299 + $0xe0] sm:$0xff] %v1660
        %1741 = vst [vmem:[%s299 + $0xe8] sm:$0xff] %v1661
        %1742 = vst [vmem:[%s299 + $0xf0] sm:$0xff] %v1662
        %1743 = vst [vmem:[%s299 + $0xf8] sm:$0xff] %v1663
        %1744 = vst [vmem:[%s299 + $0x100] sm:$0xff] %v1664
        %1745 = vst [vmem:[%s299 + $0x108] sm:$0xff] %v1665
        %1746 = vst [vmem:[%s299 + $0x110] sm:$0xff] %v1666
        %1747 = vst [vmem:[%s299 + $0x118] sm:$0xff] %v1667
        %1748 = vst [vmem:[%s299 + $0x120] sm:$0xff] %v1668
        %1749 = vst [vmem:[%s299 + $0x128] sm:$0xff] %v1669
        %1750 = vst [vmem:[%s299 + $0x130] sm:$0xff] %v1670
        %1751 = vst [vmem:[%s299 + $0x138] sm:$0xff] %v1671
        %1752 = vst [vmem:[%s299 + $0x140] sm:$0xff] %v1672
        %1753 = vst [vmem:[%s299 + $0x148] sm:$0xff] %v1673
        %1754 = vst [vmem:[%s299 + $0x150] sm:$0xff] %v1674
        %1755 = vst [vmem:[%s299 + $0x158] sm:$0xff] %v1675
        %1756 = vst [vmem:[%s299 + $0x160] sm:$0xff] %v1676
        %1757 = vst [vmem:[%s299 + $0x168] sm:$0xff] %v1677
        %1758 = vst [vmem:[%s299 + $0x170] sm:$0xff] %v1678
        %1759 = vst [vmem:[%s299 + $0x178] sm:$0xff] %v1679
        %1760 = vst [vmem:[%s299 + $0x180] sm:$0xff] %v1680
        %1761 = vst [vmem:[%s299 + $0x188] sm:$0xff] %v1681
        %1762 = vst [vmem:[%s299 + $0x190] sm:$0xff] %v1682
        %1763 = vst [vmem:[%s299 + $0x198] sm:$0xff] %v1683
        %1764 = vst [vmem:[%s299 + $0x1a0] sm:$0xff] %v1684
        %1765 = vst [vmem:[%s299 + $0x1a8] sm:$0xff] %v1685
        %1766 = vst [vmem:[%s299 + $0x1b0] sm:$0xff] %v1686
        %1767 = vst [vmem:[%s299 + $0x1b8] sm:$0xff] %v1687
        %1768 = vst [vmem:[%s299 + $0x1c0] sm:$0xff] %v1688
        %1769 = vst [vmem:[%s299 + $0x1c8] sm:$0xff] %v1689
        %1770 = vst [vmem:[%s299 + $0x1d0] sm:$0xff] %v1690
        %1771 = vst [vmem:[%s299 + $0x1d8] sm:$0xff] %v1691
        %1772 = vst [vmem:[%s299 + $0x1e0] sm:$0xff] %v1692
        %1773 = vst [vmem:[%s299 + $0x1e8] sm:$0xff] %v1693
        %1774 = vst [vmem:[%s299 + $0x1f0] sm:$0xff] %v1694
        %1775 = vst [vmem:[%s299 + $0x1f8] sm:$0xff] %v1695
        %1776 = vst [vmem:[%s299 + $0x200] sm:$0xff] %v1696
        %1777 = vst [vmem:[%s299 + $0x208] sm:$0xff] %v1697
        %1778 = vst [vmem:[%s299 + $0x210] sm:$0xff] %v1698
        %1779 = vst [vmem:[%s299 + $0x218] sm:$0xff] %v1699
        %1780 = vst [vmem:[%s299 + $0x220] sm:$0xff] %v1700
        %1781 = vst [vmem:[%s299 + $0x228] sm:$0xff] %v1701
        %1782 = vst [vmem:[%s299 + $0x230] sm:$0xff] %v1702
        %1783 = vst [vmem:[%s299 + $0x238] sm:$0xff] %v1703
        %1784 = vst [vmem:[%s299 + $0x240] sm:$0xff] %v1704
        %1785 = vst [vmem:[%s299 + $0x248] sm:$0xff] %v1705
        %1786 = vst [vmem:[%s299 + $0x250] sm:$0xff] %v1706
        %1787 = vst [vmem:[%s299 + $0x258] sm:$0xff] %v1707
        %1788 = vst [vmem:[%s299 + $0x260] sm:$0xff] %v1708
        %1789 = vst [vmem:[%s299 + $0x268] sm:$0xff] %v1709
        %1790 = vst [vmem:[%s299 + $0x270] sm:$0xff] %v1710
        %1791 = vst [vmem:[%s299 + $0x278] sm:$0xff] %v1711
        %s1792 = sand.u32 %s149, 1
        %s1793 = scalar_lea.sflag [#allocation4], %s1792
        %s1794 = sand.u32 %s149, 1
        %s1795 = smul.addr %s1794, 640
        %s1796 = scalar_lea.vmem [#allocation10], %s1795
        // Predicated region
        $region53: #{_padded_matmul.1} parent=35 // pred_check
          %p1797 = pneg %p159
        $region54: #{_padded_matmul.1} parent=35 // pred_check_branch
          %1799 = sbr.rel (%p1797) target = $region56
        $region55: #{_padded_matmul.1} parent=35 // pred_region
          %s1800 = smul.u32 80, %s27
          %s1801 = smul.u32 2, %s28
          %1803 = vsyncadd %s1793, 0
          %s1804 = smul.addr %s1800, 2
          %s1805 = sadd.s32 %s1801, %s1804
          %s1806 = smul.addr %s1805, 4
          %s1807 = scalar_lea.hbm %s4, %s1806
          %s1808 = sshll.u32 %s1796, 4
          %s1809 = int_to_ptr.vmem [resolvable:$true] %s1808
          %s1810 = sshll.u32 %s1807, 4
          %s1811 = int_to_ptr.hbm [resolvable:$true] %s1810
          %1816 = dma.vmem_to_hbm [thread:$0]  %s1809, 10240, %s1811, %s1793, 128, 128, 8
        $region56: #{_padded_matmul.1} parent=35 // pred_fallthru
          _
      $region36: #{_padded_matmul.1} parent=5 // pred_fallthru
        _
      %p1817 = scmp.le.s32.totalorder 2, %s18
      // Predicated region
      $region57: #{_padded_matmul.1} parent=5 // pred_check
        %p1818 = pneg %p1817
      $region58: #{_padded_matmul.1} parent=5 // pred_check_branch
        %1820 = sbr.rel (%p1818) target = $region60
      $region59: #{_padded_matmul.1} parent=5 // pred_region
        %s1821 = ssub.s32 %s18, 2
        // Predicated region
        $region61: #{_padded_matmul.1} parent=59 // pred_check
          %p1822 = pneg %p165
        $region62: #{_padded_matmul.1} parent=59 // pred_check_branch
          %1824 = sbr.rel (%p1822) target = $region64
        $region63: #{_padded_matmul.1} parent=59 // pred_region
          %s1825 = sand.u32 %s150, 1
          %s1826 = scalar_lea.sflag [#allocation4], %s1825
          %s1827 = sand.u32 %s150, 1
          %s1828 = smul.addr %s1827, 640
          %s1829 = scalar_lea.vmem [#allocation10], %s1828
          %1831 = dma.done %s1826, 10240
        $region64: #{_padded_matmul.1} parent=59 // pred_fallthru
          _
      $region60: #{_padded_matmul.1} parent=5 // pred_fallthru
        _
    $region6: #{_padded_matmul.1} parent=1 // loop_footer
      %s22 = sadd.s32 1, %s18
    $region7: #{_padded_matmul.1} parent=1 // loop_footer_branch
      %17 = sbr.rel target = $region3
    $region8: #{_padded_matmul.1} parent=1 // loop_exit
      _
    %1832 = vsyncpa [#allocation3], 1
    %s1833 = scalar_lea.sflag [#allocation3], 1
    %1834 = vsyncpa %s1833, 1
    %1835 = vsyncpa [#allocation6], 1
    %1836 = vsyncpa [#allocation9], 1
    %1837 = vsyncpa [#allocation4], 1
    %s1838 = scalar_lea.sflag [#allocation4], 1
    %1839 = vsyncpa %s1838, 1

</llo_original>
